<compile_context>
chip_gen: v7x
topology: tpu7x:2x2x1
jax: 0.10.0
libtpu: 0.0.40
codegen_flags: <defaults>
</compile_context>

<pallas_src>
import functools

import numpy as np

import jax
import jax.numpy as jnp
from jax import lax
from jax.experimental import pallas as pl
from jax.experimental.pallas import tpu as pltpu

# ----------------------------- configuration --------------------------------
H = 32           # plm.config.hidden_size (small synthetic size)
WINDOW = 3       # self.window
WP = WINDOW + 1  # max window length (i - window .. i inclusive)
NUM_LABELS = 6
CPAD = 128       # lane-dense (padded) logits width
N_HEAD = 8
D_K = H // N_HEAD
D_INNER = 64
N_LAYERS = 2
VOCAB = 50
SEQ = 10
LEN_D = 6
BATCH = 2


def _round_up(x, m):
    return (x + m - 1) // m * m


# weight-slab layout (rows, all padded to 6H = 192 lanes):
#   [0      , 2H)      block-diag(W1, W1)                     (2H, 2H)
#   [2H     , 4H)      gate-packed block-diag(x2h_c, x2h_s)   (2H, 6H)
#   [4H     , 6H)      gate-packed block-diag(h2h_c, h2h_s)   (2H, 6H)
#   [6H     , 12H)     block-diag(W2, W3, W4)                 (6H, 3H)
#   [12H    , 15H)     fc weight, padded to CPAD cols         (3H, CPAD)
#   [15H    , 15H+5)   bias rows: b1|b1, x2h_b, h2h_b, b2|b3|b4, fc_b
WROWS = _round_up(15 * H + 5, 8)


def _num_grid_chunks(batch):
    """v5e/v6e (1 TC): fully collapse the grid.  v7x (2 TCs): 2-way parallel."""
    try:
        kind = jax.devices()[0].device_kind.lower()
    except Exception:
        kind = ""
    if "v7" in kind or "7x" in kind:
        return min(batch, 2)
    return 1


# ============ Pallas kernel: fused per-chunk step path + fc + CE =============
def fused_dialog_kernel(act_ref, aux_ref, w_ref, logits_ref, loss_ref,
                        xt_scr, hxall_scr, *, ld, dpc, r):
    h = H
    h2 = 2 * h
    wp = WP
    wpr = wp * r

    # ------- resident, coalesced weight slab: static row/col sections -------
    w1d = w_ref[0:h2, 0:h2]
    wx2h = w_ref[h2:2 * h2, 0:6 * h]
    wh2h = w_ref[2 * h2:3 * h2, 0:6 * h]
    w234 = w_ref[3 * h2:3 * h2 + 6 * h, 0:3 * h]
    fcw = w_ref[3 * h2 + 6 * h:3 * h2 + 9 * h, 0:CPAD]
    brow = 3 * h2 + 9 * h
    b1p = w_ref[brow + 0:brow + 1, 0:h2]
    bx2h = w_ref[brow + 1:brow + 2, 0:6 * h]
    bh2h = w_ref[brow + 2:brow + 3, 0:6 * h]
    b234 = w_ref[brow + 3:brow + 4, 0:3 * h]
    fcb = w_ref[brow + 4:brow + 5, 0:CPAD]

    # ------- per-chunk activations (both streams packed on lanes) -----------
    act = act_ref[0]                       # ((WP+1)*R, 2H)
    slab = act[0:wpr, :]                   # (WP*R, 2H)  window rows, k-major
    orig = act[wpr:wpr + r, :]             # (R, 2H)     origins (out_c|out_s)
    aux = aux_ref[0]                       # (WP*R, 3+dpc)
    amask = aux[:, 0:2]                    # local-row validity (k < len-1)
    labf = aux[0:r, 2:3]                   # labels as float
    vcols = aux[0:r, 3:3 + dpc]            # per-dialog validity columns

    # ------- windowed W_1 attention, slab-wide scores, both streams ---------
    lp = jnp.dot(slab, w1d, preferred_element_type=jnp.float32) + b1p
    orig_t = jnp.concatenate([orig] * wp, axis=0)            # (WP*R, 2H)
    prod = lp * orig_t
    s_c = jnp.sum(prod[:, 0:h], axis=-1, keepdims=True)
    s_s = jnp.sum(prod[:, h:h2], axis=-1, keepdims=True)
    scores = jnp.concatenate([s_c, s_s], axis=-1)            # (WP*R, 2)
    e = jnp.exp(jnp.tanh(scores)) * amask                    # tanh-bounded
    e_full = jnp.concatenate([jnp.broadcast_to(e[:, 0:1], (wpr, h)),
                              jnp.broadcast_to(e[:, 1:2], (wpr, h))], axis=-1)
    num = jnp.zeros((r, h2), jnp.float32)
    e_sum = jnp.zeros((r, 2), jnp.float32)
    for k in range(wp):                                      # static, wp == 4
        sl = slice(k * r, (k + 1) * r)
        num = num + e_full[sl] * slab[sl]
        e_sum = e_sum + e[sl]
    denom = jnp.where(e_sum <= 0.0, 1.0, e_sum)              # empty window -> 0
    den_full = jnp.concatenate([jnp.broadcast_to(denom[:, 0:1], (r, h)),
                                jnp.broadcast_to(denom[:, 1:2], (r, h))],
                               axis=-1)
    state = num / den_full                                   # (R, 2H) [c | s]

    # ------- batched x2h for both GRU cells (gate-major packed lanes) -------
    xt_scr[...] = (jnp.dot(state, wx2h, preferred_element_type=jnp.float32)
                   + bx2h)                                   # (R, 6H)

    # ------- GRU recurrence: all dialogs of the chunk + both cells packed ---
    hxall_scr[...] = jnp.zeros_like(hxall_scr)
    hx = jnp.zeros((dpc, h2), jnp.float32)
    for i in range(ld):                                      # static unroll
        xt = xt_scr[i * dpc:(i + 1) * dpc, :]                # (dpc, 6H)
        ht = jnp.dot(hx, wh2h, preferred_element_type=jnp.float32) + bh2h
        reset = jax.nn.sigmoid(xt[:, 0:h2] + ht[:, 0:h2])
        update = jax.nn.sigmoid(xt[:, h2:2 * h2] + ht[:, h2:2 * h2])
        newg = jnp.tanh(xt[:, 2 * h2:3 * h2] + reset * ht[:, 2 * h2:3 * h2])
        hx = update * hx + (1.0 - update) * newg             # (dpc, 2H)
        hxall_scr[i * dpc:(i + 1) * dpc, :] = hx

    # ------- fused W_2 / W_3 / W_4, fc projection, CrossEntropy -------------
    big = jnp.concatenate([orig, state, hxall_scr[...]], axis=-1)   # (R, 6H)
    f3 = (jnp.dot(big, w234, preferred_element_type=jnp.float32)
          + b234)                                            # [out_f|gs_f|hx_f]
    logits = (jnp.dot(f3, fcw, preferred_element_type=jnp.float32)
              + fcb)                                         # (R, CPAD)
    logits_ref[0] = logits                                   # lane-dense store

    col = lax.broadcasted_iota(jnp.int32, (r, CPAD), 1)
    masked = jnp.where(col < NUM_LABELS, logits, -1e30)      # ignore pad cols
    m = jnp.max(masked, axis=1, keepdims=True)
    lse = jnp.log(jnp.sum(jnp.exp(masked - m), axis=1, keepdims=True)) + m
    onehot = (col.astype(jnp.float32) == labf).astype(jnp.float32)
    picked = jnp.sum(logits * onehot, axis=1, keepdims=True)
    per_row = lse - picked                                   # (R, 1)
    nval = jnp.maximum(jnp.sum(vcols, axis=0, keepdims=True), 1.0)  # (1, dpc)
    loss_ref[0] = jnp.sum(per_row * vcols, axis=0, keepdims=True) / nval


@functools.lru_cache(maxsize=None)
def make_fused_call(g, dpc, r, ld):
    cj = lambda i: (i, 0, 0)
    return pl.pallas_call(
        functools.partial(fused_dialog_kernel, ld=ld, dpc=dpc, r=r),
        out_shape=(jax.ShapeDtypeStruct((g, r, CPAD), jnp.float32),
                   jax.ShapeDtypeStruct((g, 1, dpc), jnp.float32)),
        grid_spec=pltpu.PrefetchScalarGridSpec(
            num_scalar_prefetch=0,
            grid=(g,),
            in_specs=[
                pl.BlockSpec((1, (WP + 1) * r, 2 * H), cj),      # act slab
                pl.BlockSpec((1, WP * r, 3 + dpc), cj),          # aux slab
                pl.BlockSpec((WROWS, 6 * H), lambda i: (0, 0)),  # resident W
            ],
            out_specs=(pl.BlockSpec((1, r, CPAD), cj),
                       pl.BlockSpec((1, 1, dpc), cj)),
            scratch_shapes=[pltpu.VMEM((r, 6 * H), jnp.float32),   # x_t rows
                            pltpu.VMEM((r, 2 * H), jnp.float32)]),  # hx rows
        compiler_params=pltpu.CompilerParams(
            dimension_semantics=("parallel",)),
    )


# ================= host-side weight coalescing (traced, tiny) ===============
def pack_weight_slab(p):
    f32 = jnp.float32
    z = lambda s: jnp.zeros(s, f32)

    def blkdiag(a, b):
        top = jnp.concatenate([a, z((a.shape[0], b.shape[1]))], axis=1)
        bot = jnp.concatenate([z((b.shape[0], a.shape[1])), b], axis=1)
        return jnp.concatenate([top, bot], axis=0)

    def gate_pack_w(wc, ws):
        return jnp.concatenate(
            [blkdiag(wc[:, gi * H:(gi + 1) * H], ws[:, gi * H:(gi + 1) * H])
             for gi in range(3)], axis=1)

    def gate_pack_b(bc, bs):
        return jnp.concatenate(
            [jnp.concatenate([bc[:, gi * H:(gi + 1) * H],
                              bs[:, gi * H:(gi + 1) * H]], axis=1)
             for gi in range(3)], axis=1)

    w1d = blkdiag(p['W1_w'], p['W1_w'])
    wx2h = gate_pack_w(p['x2hc_w'], p['x2hs_w'])
    wh2h = gate_pack_w(p['h2hc_w'], p['h2hs_w'])
    bx2h = gate_pack_b(p['x2hc_b'], p['x2hs_b'])
    bh2h = gate_pack_b(p['h2hc_b'], p['h2hs_b'])
    w234 = z((6 * H, 3 * H))
    w234 = w234.at[0:2 * H, 0:H].set(p['W2_w'])
    w234 = w234.at[2 * H:4 * H, H:2 * H].set(p['W3_w'])
    w234 = w234.at[4 * H:6 * H, 2 * H:3 * H].set(p['W4_w'])
    b234 = jnp.concatenate([p['W2_b'], p['W3_b'], p['W4_b']], axis=1)
    fcw = jnp.pad(p['fc_w'], ((0, 0), (0, CPAD - NUM_LABELS)))
    fcb = jnp.pad(p['fc_b'], ((0, 0), (0, CPAD - NUM_LABELS)))
    b1p = jnp.concatenate([p['W1_b'], p['W1_b']], axis=1)

    lw = 6 * H
    padl = lambda x: jnp.pad(x, ((0, 0), (0, lw - x.shape[1])))
    slab = jnp.concatenate([padl(w1d), padl(wx2h), padl(wh2h), padl(w234),
                            padl(fcw), padl(b1p), padl(bx2h), padl(bh2h),
                            padl(b234), padl(fcb)], axis=0)
    return jnp.pad(slab, ((0, WROWS - slab.shape[0]), (0, 0)))


# ============================ plain-JAX glue =================================
# TODO(synk): the pretrained HuggingFace PLM (`from_pretrained`) cannot be
# reproduced; it is replaced by a deterministic token-embedding + masked mean
# pool + tanh projection producing the per-utterance [CLS]-like embedding.
def toy_plm(p, input_ids, attention_mask):
    emb = p['tok_emb'][input_ids]                              # (len_d, seq, H)
    mask = attention_mask[..., None].astype(jnp.float32)
    pooled = (emb * mask).sum(1) / jnp.maximum(mask.sum(1), 1.0)
    return jnp.tanh(pooled @ p['plm_w'] + p['plm_b'])          # (len_d, H)


def layer_norm(x, g, b, eps=1e-6):
    mu = x.mean(-1, keepdims=True)
    var = ((x - mu) ** 2).mean(-1, keepdims=True)
    return (x - mu) / jnp.sqrt(var + eps) * g + b


# TODO(synk): exact VanillaEncoder internals are not available; a standard
# post-LN transformer encoder (MHA + FFN) with key masking is used so the
# batched fixed-shape (WP-padded) windows are equivalent, on valid rows, to
# the per-window variable-length runs of the reference.
def encoder_layer(lp, x, mask):
    n, l, _ = x.shape
    q = (x @ lp['wq']).reshape(n, l, N_HEAD, D_K)
    k = (x @ lp['wk']).reshape(n, l, N_HEAD, D_K)
    v = (x @ lp['wv']).reshape(n, l, N_HEAD, D_K)
    att = jnp.einsum('nqhd,nkhd->nhqk', q, k) / jnp.sqrt(jnp.float32(D_K))
    att = jnp.where(mask[:, None, None, :] > 0.0, att, -1e30)
    att = jax.nn.softmax(att, axis=-1)
    o = jnp.einsum('nhqk,nkhd->nqhd', att, v).reshape(n, l, H) @ lp['wo']
    x = layer_norm(x + o, lp['ln1_g'], lp['ln1_b'])
    f = jax.nn.relu(x @ lp['w1'] + lp['b1']) @ lp['w2'] + lp['b2']
    return layer_norm(x + f, lp['ln2_g'], lp['ln2_b'])


def encoder_forward(p_enc, x, mask):       # x: (N, WP, H), mask: (N, WP)
    for lp in p_enc:
        x = encoder_layer(lp, x, mask)
    return x


# ============================ parameter init =================================
def init_params(key):
    keys = iter(jax.random.split(key, 128))

    def nrm(shape, scale=0.05):
        return scale * jax.random.normal(next(keys), shape, jnp.float32)

    p = {
        'tok_emb': nrm((VOCAB, H), 0.1),
        'plm_w': nrm((H, H)), 'plm_b': jnp.zeros((H,), jnp.float32),
        'W1_w': nrm((H, H)), 'W1_b': jnp.zeros((1, H), jnp.float32),
        'x2hc_w': nrm((H, 3 * H)), 'x2hc_b': jnp.zeros((1, 3 * H), jnp.float32),
        'h2hc_w': nrm((H, 3 * H)), 'h2hc_b': jnp.zeros((1, 3 * H), jnp.float32),
        'x2hs_w': nrm((H, 3 * H)), 'x2hs_b': jnp.zeros((1, 3 * H), jnp.float32),
        'h2hs_w': nrm((H, 3 * H)), 'h2hs_b': jnp.zeros((1, 3 * H), jnp.float32),
        'W2_w': nrm((2 * H, H)), 'W2_b': jnp.zeros((1, H), jnp.float32),
        'W3_w': nrm((2 * H, H)), 'W3_b': jnp.zeros((1, H), jnp.float32),
        'W4_w': nrm((2 * H, H)), 'W4_b': jnp.zeros((1, H), jnp.float32),
        'fc_w': nrm((3 * H, NUM_LABELS)),
        'fc_b': jnp.zeros((1, NUM_LABELS), jnp.float32),
    }
    layers = []
    for _ in range(N_LAYERS):
        layers.append({
            'wq': nrm((H, H)), 'wk': nrm((H, H)), 'wv': nrm((H, H)),
            'wo': nrm((H, H)),
            'ln1_g': jnp.ones((H,), jnp.float32), 'ln1_b': jnp.zeros((H,), jnp.float32),
            'w1': nrm((H, D_INNER)), 'b1': jnp.zeros((D_INNER,), jnp.float32),
            'w2': nrm((D_INNER, H)), 'b2': jnp.zeros((H,), jnp.float32),
            'ln2_g': jnp.ones((H,), jnp.float32), 'ln2_b': jnp.zeros((H,), jnp.float32),
        })
    p['encoder'] = layers
    return p


# ======================= static window metadata (host) =======================
def build_window_meta(batch_speakers, batch_label_ids):
    batch = len(batch_label_ids)
    len_ds = [len(l) for l in batch_label_ids]
    ld = max(len_ds)

    ctx_idx = np.zeros((batch, ld, WP), np.int32)
    ctx_len = np.ones((batch, ld), np.int32)
    spk_idx = np.zeros((batch, ld, WP), np.int32)
    spk_len = np.ones((batch, ld), np.int32)
    labels = np.zeros((batch, ld), np.int32)
    uvalid = np.zeros((batch, ld), np.float32)

    for j in range(batch):
        speakers = batch_speakers[j]
        labs = batch_label_ids[j]
        s2u = {}
        for i, spk in enumerate(speakers):
            s2u.setdefault(spk, []).append(i)
        for i in range(len_ds[j]):
            rows = list(range(max(i - WINDOW, 0), i + 1))
            ctx_len[j, i] = len(rows)
            ctx_idx[j, i] = rows + [rows[0]] * (WP - len(rows))
            us = s2u[speakers[i]]
            idx = us.index(i)
            srows = us[max(idx - WINDOW, 0): idx + 1]
            spk_len[j, i] = len(srows)
            spk_idx[j, i] = srows + [srows[0]] * (WP - len(srows))
            labels[j, i] = labs[i]
            uvalid[j, i] = 1.0

    karange = np.arange(WP)[None, None, :]
    enc_mask_c = (karange < ctx_len[..., None]).astype(np.float32)
    enc_mask_s = (karange < spk_len[..., None]).astype(np.float32)
    amask_c = (karange < (ctx_len - 1)[..., None]).astype(np.float32)
    amask_s = (karange < (spk_len - 1)[..., None]).astype(np.float32)

    return dict(
        ld=ld, len_ds=len_ds,
        ctx_idx=jnp.asarray(ctx_idx), spk_idx=jnp.asarray(spk_idx),
        ctx_last=jnp.asarray(ctx_len - 1), spk_last=jnp.asarray(spk_len - 1),
        enc_mask_c=jnp.asarray(enc_mask_c), enc_mask_s=jnp.asarray(enc_mask_s),
        amask_c=jnp.asarray(amask_c), amask_s=jnp.asarray(amask_s),
        labels=jnp.asarray(labels), uvalid=jnp.asarray(uvalid),
    )


# ============================== forward core =================================
@functools.partial(jax.jit, static_argnames=('ld', 'g', 'dpc', 'r'))
def _forward_core(params, input_ids_list, attn_mask_list,
                  ctx_idx, spk_idx, ctx_last, spk_last,
                  enc_mask_c, enc_mask_s, amask_c, amask_s,
                  labels, uvalid, *, ld, g, dpc, r):
    batch = ctx_idx.shape[0]
    bp = g * dpc

    # per-utterance [CLS]-like embeddings, padded to ld rows per dialog
    embeds = []
    for j in range(batch):
        e = toy_plm(params, input_ids_list[j], attn_mask_list[j])   # (len_d, H)
        embeds.append(jnp.pad(e, ((0, ld - e.shape[0]), (0, 0))))
    embeds = jnp.stack(embeds)                                      # (batch, ld, H)

    barange = jnp.arange(batch)[:, None, None]
    win_c = embeds[barange, ctx_idx]                                # (batch, ld, WP, H)
    win_s = embeds[barange, spk_idx]

    def run_encoder(win, mask):
        out = encoder_forward(params['encoder'],
                              win.reshape(batch * ld, WP, H),
                              mask.reshape(batch * ld, WP))
        return out.reshape(batch, ld, WP, H)

    out_c = run_encoder(win_c, enc_mask_c)
    out_s = run_encoder(win_s, enc_mask_s)

    b_i = jnp.arange(batch)[:, None]
    l_i = jnp.arange(ld)[None, :]
    orig_c = out_c[b_i, l_i, ctx_last]                              # (batch, ld, H)
    orig_s = out_s[b_i, l_i, spk_last]

    def pad_b(x):
        return jnp.pad(x, ((0, bp - batch),) + ((0, 0),) * (x.ndim - 1))

    win = pad_b(jnp.concatenate([out_c, out_s], axis=-1))           # (bp, ld, WP, 2H)
    org = pad_b(jnp.concatenate([orig_c, orig_s], axis=-1))         # (bp, ld, 2H)
    amc = pad_b(amask_c)
    ams = pad_b(amask_s)
    labf = pad_b(labels.astype(jnp.float32))
    uval = pad_b(uvalid)

    def to_slab(x):      # (bp, ld, WP, ...) -> (g, WP*r, ...) k-major, time-major rows
        tail = x.shape[3:]
        x = x.reshape((g, dpc, ld, WP) + tail)
        x = jnp.moveaxis(x, 3, 1)                     # (g, WP, dpc, ld, ...)
        x = jnp.swapaxes(x, 2, 3)                     # (g, WP, ld, dpc, ...)
        x = x.reshape((g, WP, ld * dpc) + tail)
        x = jnp.pad(x, ((0, 0), (0, 0), (0, r - ld * dpc)) + ((0, 0),) * len(tail))
        return x.reshape((g, WP * r) + tail)

    def to_rows(x):      # (bp, ld, ...) -> (g, r, ...) time-major rows
        tail = x.shape[2:]
        x = x.reshape((g, dpc, ld) + tail)
        x = jnp.swapaxes(x, 1, 2)                     # (g, ld, dpc, ...)
        x = x.reshape((g, ld * dpc) + tail)
        return jnp.pad(x, ((0, 0), (0, r - ld * dpc)) + ((0, 0),) * len(tail))

    slab = to_slab(win)                                             # (g, WP*r, 2H)
    org_rows = to_rows(org)                                         # (g, r, 2H)
    act = jnp.concatenate([slab, org_rows], axis=1)                 # (g, (WP+1)*r, 2H)

    amc_s = to_slab(amc)                                            # (g, WP*r)
    ams_s = to_slab(ams)
    lab_rows = to_rows(labf)                                        # (g, r)
    uv = jnp.swapaxes(uval.reshape(g, dpc, ld), 1, 2)               # (g, ld, dpc)
    eye = jnp.eye(dpc, dtype=jnp.float32)
    vcols = (uv[..., None] * eye[None, None]).reshape(g, ld * dpc, dpc)
    vcols = jnp.pad(vcols, ((0, 0), (0, r - ld * dpc), (0, 0)))

    aux = jnp.zeros((g, WP * r, 3 + dpc), jnp.float32)
    aux = aux.at[:, :, 0].set(amc_s)
    aux = aux.at[:, :, 1].set(ams_s)
    aux = aux.at[:, :r, 2].set(lab_rows)
    aux = aux.at[:, :r, 3:].set(vcols)

    wslab = pack_weight_slab(params)

    fused = make_fused_call(g, dpc, r, ld)
    logits_all, loss_all = fused(act, aux, wslab)

    lg = logits_all[:, :ld * dpc, :NUM_LABELS].reshape(g, ld, dpc, NUM_LABELS)
    lg = jnp.swapaxes(lg, 1, 2).reshape(bp, ld, NUM_LABELS)[:batch]
    return lg, jnp.sum(loss_all)


def model_forward(params, batch_input_ids, batch_attention_mask,
                  batch_speakers, batch_label_ids, mode='eval'):
    # NOTE: batch_dialog_generated_* inputs of the reference forward are unused
    # by the reference computation and therefore omitted here.
    meta = build_window_meta(batch_speakers, batch_label_ids)
    batch = len(batch_label_ids)
    g = _num_grid_chunks(batch)
    dpc = -(-batch // g)                       # dialogs per grid step
    r = _round_up(meta['ld'] * dpc, 8)         # sublane-aligned rows per step

    logits_all, all_loss = _forward_core(
        params, list(batch_input_ids), list(batch_attention_mask),
        meta['ctx_idx'], meta['spk_idx'], meta['ctx_last'], meta['spk_last'],
        meta['enc_mask_c'], meta['enc_mask_s'], meta['amask_c'], meta['amask_s'],
        meta['labels'], meta['uvalid'],
        ld=meta['ld'], g=g, dpc=dpc, r=r)

    if mode == 'train':
        return all_loss
    all_logits = [logits_all[j, :meta['len_ds'][j]] for j in range(batch)]
    return all_loss, all_logits, batch_label_ids


# ================================== demo =====================================
if __name__ == "__main__":
    root = jax.random.PRNGKey(0)
    pkey, dkey = jax.random.split(root)
    params = init_params(pkey)

    k1, k2 = jax.random.split(dkey)
    batch_input_ids = [
        jax.random.randint(k1, (LEN_D, SEQ), 0, VOCAB, dtype=jnp.int32),
        jax.random.randint(k2, (LEN_D, SEQ), 0, VOCAB, dtype=jnp.int32),
    ]
    batch_attention_mask = [jnp.ones((LEN_D, SEQ), jnp.int32) for _ in range(BATCH)]
    batch_speakers = [[0, 1, 0, 1, 0, 1],
                      [0, 0, 1, 1, 0, 1]]
    batch_label_ids = [[0, 2, 1, 4, 3, 5],
                       [1, 1, 0, 3, 2, 4]]

    loss, logits_list, _ = model_forward(
        params, batch_input_ids, batch_attention_mask,
        batch_speakers, batch_label_ids, mode='eval')

    jax.block_until_ready(loss)
    for lg in logits_list:
        jax.block_until_ready(lg)

    assert bool(jnp.isfinite(loss)), "loss is not finite"
    assert logits_list[0].shape == (LEN_D, NUM_LABELS)
    print("KERNEL_OK")
</pallas_src>

<mosaic_0001>
module attributes {stable_mosaic.version = 11 : i64} {
  func.func @fused_dialog_kernel(%arg0: i32, %arg1: memref<1x80x64xf32, #tpu.memory_space<vmem>>, %arg2: memref<1x64x5xf32, #tpu.memory_space<vmem>>, %arg3: memref<488x192xf32, #tpu.memory_space<vmem>>, %arg4: memref<1x16x128xf32, #tpu.memory_space<vmem>>, %arg5: memref<1x1x2xf32, #tpu.memory_space<vmem>>, %arg6: memref<16x192xf32, #tpu.memory_space<vmem>>, %arg7: memref<16x64xf32, #tpu.memory_space<vmem>>) attributes {dimension_semantics = [#tpu.dimension_semantics<parallel>], iteration_bounds = array<i64: 1>, scalar_prefetch = 0 : i64, scratch_operands = 2 : i64, tpu.core_type = #tpu.core_type<tc>, window_params = [{transform_indices = @transform_0, window_bounds = array<i64: 1, 80, 64>}, {transform_indices = @transform_1, window_bounds = array<i64: 1, 64, 5>}, {pipeline_mode = #tpu.pipeline_mode<synchronous>, transform_indices = @transform_2, window_bounds = array<i64: 488, 192>}, {transform_indices = @transform_3, window_bounds = array<i64: 1, 16, 128>}, {transform_indices = @transform_4, window_bounds = array<i64: 1, 1, 2>}]} {
    %c0 = arith.constant 0 : index
    %c0_0 = arith.constant 0 : index
    %0 = vector.load %arg3[%c0, %c0_0] : memref<488x192xf32, #tpu.memory_space<vmem>>, vector<64x64xf32>
    %c64 = arith.constant 64 : index
    %c0_1 = arith.constant 0 : index
    %1 = vector.load %arg3[%c64, %c0_1] : memref<488x192xf32, #tpu.memory_space<vmem>>, vector<64x192xf32>
    %c128 = arith.constant 128 : index
    %c0_2 = arith.constant 0 : index
    %2 = vector.load %arg3[%c128, %c0_2] : memref<488x192xf32, #tpu.memory_space<vmem>>, vector<64x192xf32>
    %c192 = arith.constant 192 : index
    %c0_3 = arith.constant 0 : index
    %3 = vector.load %arg3[%c192, %c0_3] : memref<488x192xf32, #tpu.memory_space<vmem>>, vector<192x96xf32>
    %c384 = arith.constant 384 : index
    %c0_4 = arith.constant 0 : index
    %4 = vector.load %arg3[%c384, %c0_4] : memref<488x192xf32, #tpu.memory_space<vmem>>, vector<96x128xf32>
    %c480 = arith.constant 480 : index
    %c0_5 = arith.constant 0 : index
    %5 = vector.load %arg3[%c480, %c0_5] : memref<488x192xf32, #tpu.memory_space<vmem>>, vector<1x64xf32>
    %c481 = arith.constant 481 : index
    %c0_6 = arith.constant 0 : index
    %6 = vector.load %arg3[%c481, %c0_6] : memref<488x192xf32, #tpu.memory_space<vmem>>, vector<1x192xf32>
    %c482 = arith.constant 482 : index
    %c0_7 = arith.constant 0 : index
    %7 = vector.load %arg3[%c482, %c0_7] : memref<488x192xf32, #tpu.memory_space<vmem>>, vector<1x192xf32>
    %c483 = arith.constant 483 : index
    %c0_8 = arith.constant 0 : index
    %8 = vector.load %arg3[%c483, %c0_8] : memref<488x192xf32, #tpu.memory_space<vmem>>, vector<1x96xf32>
    %c484 = arith.constant 484 : index
    %c0_9 = arith.constant 0 : index
    %9 = vector.load %arg3[%c484, %c0_9] : memref<488x192xf32, #tpu.memory_space<vmem>>, vector<1x128xf32>
    %c0_10 = arith.constant 0 : index
    %c0_11 = arith.constant 0 : index
    %c0_12 = arith.constant 0 : index
    %10 = vector.load %arg1[%c0_10, %c0_11, %c0_12] : memref<1x80x64xf32, #tpu.memory_space<vmem>>, vector<1x80x64xf32>
    %11 = vector.shape_cast %10 : vector<1x80x64xf32> to vector<80x64xf32>
    %12 = vector.extract_strided_slice %11 {offsets = [0, 0], sizes = [64, 64], strides = [1, 1]} : vector<80x64xf32> to vector<64x64xf32>
    %13 = vector.extract_strided_slice %11 {offsets = [64, 0], sizes = [16, 64], strides = [1, 1]} : vector<80x64xf32> to vector<16x64xf32>
    %c0_13 = arith.constant 0 : index
    %c0_14 = arith.constant 0 : index
    %c0_15 = arith.constant 0 : index
    %14 = vector.load %arg2[%c0_13, %c0_14, %c0_15] : memref<1x64x5xf32, #tpu.memory_space<vmem>>, vector<1x64x5xf32>
    %15 = vector.shape_cast %14 : vector<1x64x5xf32> to vector<64x5xf32>
    %16 = vector.extract_strided_slice %15 {offsets = [0, 0], sizes = [64, 2], strides = [1, 1]} : vector<64x5xf32> to vector<64x2xf32>
    %17 = vector.extract_strided_slice %15 {offsets = [0, 2], sizes = [16, 1], strides = [1, 1]} : vector<64x5xf32> to vector<16x1xf32>
    %18 = vector.extract_strided_slice %15 {offsets = [0, 3], sizes = [16, 2], strides = [1, 1]} : vector<64x5xf32> to vector<16x2xf32>
    %cst = arith.constant dense<0.000000e+00> : vector<64x64xf32>
    %19 = tpu.matmul %12, %0, %cst {dimension_numbers = #tpu.dot_dimension_numbers<[1], [0], [0], [1], [0, 0, 1, 1], [], []>} : vector<64x64xf32>, vector<64x64xf32>, vector<64x64xf32> -> vector<64x64xf32>
    %20 = vector.broadcast %5 : vector<1x64xf32> to vector<64x64xf32>
    %21 = arith.addf %19, %20 : vector<64x64xf32>
    %22 = tpu.concatenate %13, %13, %13, %13 in 0 : vector<16x64xf32>, vector<16x64xf32>, vector<16x64xf32>, vector<16x64xf32> -> vector<64x64xf32>
    %23 = arith.mulf %21, %22 : vector<64x64xf32>
    %24 = vector.extract_strided_slice %23 {offsets = [0, 0], sizes = [64, 32], strides = [1, 1]} : vector<64x64xf32> to vector<64x32xf32>
    %cst_16 = arith.constant dense<0.000000e+00> : vector<64xf32>
    %25 = vector.multi_reduction <add>, %24, %cst_16 [1] : vector<64x32xf32> to vector<64xf32>
    %26 = vector.shape_cast %25 : vector<64xf32> to vector<64x1xf32>
    %27 = vector.extract_strided_slice %23 {offsets = [0, 32], sizes = [64, 32], strides = [1, 1]} : vector<64x64xf32> to vector<64x32xf32>
    %cst_17 = arith.constant dense<0.000000e+00> : vector<64xf32>
    %28 = vector.multi_reduction <add>, %27, %cst_17 [1] : vector<64x32xf32> to vector<64xf32>
    %29 = vector.shape_cast %28 : vector<64xf32> to vector<64x1xf32>
    %30 = tpu.concatenate %26, %29 in 1 : vector<64x1xf32>, vector<64x1xf32> -> vector<64x2xf32>
    %31 = math.tanh %30 : vector<64x2xf32>
    %32 = math.exp %31 : vector<64x2xf32>
    %33 = arith.mulf %32, %16 : vector<64x2xf32>
    %34 = vector.extract_strided_slice %33 {offsets = [0, 0], sizes = [64, 1], strides = [1, 1]} : vector<64x2xf32> to vector<64x1xf32>
    %35 = vector.shape_cast %34 : vector<64x1xf32> to vector<64x1xf32>
    %36 = vector.broadcast %35 : vector<64x1xf32> to vector<64x32xf32>
    %37 = vector.extract_strided_slice %33 {offsets = [0, 1], sizes = [64, 1], strides = [1, 1]} : vector<64x2xf32> to vector<64x1xf32>
    %38 = vector.shape_cast %37 : vector<64x1xf32> to vector<64x1xf32>
    %39 = vector.broadcast %38 : vector<64x1xf32> to vector<64x32xf32>
    %40 = tpu.concatenate %36, %39 in 1 : vector<64x32xf32>, vector<64x32xf32> -> vector<64x64xf32>
    %cst_18 = arith.constant 0.000000e+00 : f32
    %41 = vector.broadcast %cst_18 : f32 to vector<16x64xf32>
    %cst_19 = arith.constant 0.000000e+00 : f32
    %42 = vector.broadcast %cst_19 : f32 to vector<16x2xf32>
    %43 = vector.extract_strided_slice %40 {offsets = [0, 0], sizes = [16, 64], strides = [1, 1]} : vector<64x64xf32> to vector<16x64xf32>
    %44 = vector.extract_strided_slice %12 {offsets = [0, 0], sizes = [16, 64], strides = [1, 1]} : vector<64x64xf32> to vector<16x64xf32>
    %45 = arith.mulf %43, %44 : vector<16x64xf32>
    %46 = arith.addf %41, %45 : vector<16x64xf32>
    %47 = vector.extract_strided_slice %33 {offsets = [0, 0], sizes = [16, 2], strides = [1, 1]} : vector<64x2xf32> to vector<16x2xf32>
    %48 = arith.addf %42, %47 : vector<16x2xf32>
    %49 = vector.extract_strided_slice %40 {offsets = [16, 0], sizes = [16, 64], strides = [1, 1]} : vector<64x64xf32> to vector<16x64xf32>
    %50 = vector.extract_strided_slice %12 {offsets = [16, 0], sizes = [16, 64], strides = [1, 1]} : vector<64x64xf32> to vector<16x64xf32>
    %51 = arith.mulf %49, %50 : vector<16x64xf32>
    %52 = arith.addf %46, %51 : vector<16x64xf32>
    %53 = vector.extract_strided_slice %33 {offsets = [16, 0], sizes = [16, 2], strides = [1, 1]} : vector<64x2xf32> to vector<16x2xf32>
    %54 = arith.addf %48, %53 : vector<16x2xf32>
    %55 = vector.extract_strided_slice %40 {offsets = [32, 0], sizes = [16, 64], strides = [1, 1]} : vector<64x64xf32> to vector<16x64xf32>
    %56 = vector.extract_strided_slice %12 {offsets = [32, 0], sizes = [16, 64], strides = [1, 1]} : vector<64x64xf32> to vector<16x64xf32>
    %57 = arith.mulf %55, %56 : vector<16x64xf32>
    %58 = arith.addf %52, %57 : vector<16x64xf32>
    %59 = vector.extract_strided_slice %33 {offsets = [32, 0], sizes = [16, 2], strides = [1, 1]} : vector<64x2xf32> to vector<16x2xf32>
    %60 = arith.addf %54, %59 : vector<16x2xf32>
    %61 = vector.extract_strided_slice %40 {offsets = [48, 0], sizes = [16, 64], strides = [1, 1]} : vector<64x64xf32> to vector<16x64xf32>
    %62 = vector.extract_strided_slice %12 {offsets = [48, 0], sizes = [16, 64], strides = [1, 1]} : vector<64x64xf32> to vector<16x64xf32>
    %63 = arith.mulf %61, %62 : vector<16x64xf32>
    %64 = arith.addf %58, %63 : vector<16x64xf32>
    %65 = vector.extract_strided_slice %33 {offsets = [48, 0], sizes = [16, 2], strides = [1, 1]} : vector<64x2xf32> to vector<16x2xf32>
    %66 = arith.addf %60, %65 : vector<16x2xf32>
    %cst_20 = arith.constant 0.000000e+00 : f32
    %67 = vector.broadcast %cst_20 : f32 to vector<16x2xf32>
    %68 = arith.cmpf ole, %66, %67 : vector<16x2xf32>
    %cst_21 = arith.constant 1.000000e+00 : f32
    %69 = vector.broadcast %cst_21 : f32 to vector<16x2xf32>
    %70 = arith.select %68, %69, %66 : vector<16x2xi1>, vector<16x2xf32>
    %71 = vector.extract_strided_slice %70 {offsets = [0, 0], sizes = [16, 1], strides = [1, 1]} : vector<16x2xf32> to vector<16x1xf32>
    %72 = vector.shape_cast %71 : vector<16x1xf32> to vector<16x1xf32>
    %73 = vector.broadcast %72 : vector<16x1xf32> to vector<16x32xf32>
    %74 = vector.extract_strided_slice %70 {offsets = [0, 1], sizes = [16, 1], strides = [1, 1]} : vector<16x2xf32> to vector<16x1xf32>
    %75 = vector.shape_cast %74 : vector<16x1xf32> to vector<16x1xf32>
    %76 = vector.broadcast %75 : vector<16x1xf32> to vector<16x32xf32>
    %77 = tpu.concatenate %73, %76 in 1 : vector<16x32xf32>, vector<16x32xf32> -> vector<16x64xf32>
    %78 = arith.divf %64, %77 : vector<16x64xf32>
    %cst_22 = arith.constant dense<0.000000e+00> : vector<16x192xf32>
    %79 = tpu.matmul %78, %1, %cst_22 {dimension_numbers = #tpu.dot_dimension_numbers<[1], [0], [0], [1], [0, 0, 1, 1], [], []>} : vector<16x64xf32>, vector<64x192xf32>, vector<16x192xf32> -> vector<16x192xf32>
    %80 = vector.broadcast %6 : vector<1x192xf32> to vector<16x192xf32>
    %81 = arith.addf %79, %80 : vector<16x192xf32>
    %c0_23 = arith.constant 0 : index
    %c0_24 = arith.constant 0 : index
    %82 = vector.load %arg6[%c0_23, %c0_24] : memref<16x192xf32, #tpu.memory_space<vmem>>, vector<16x192xf32>
    tpu.vector_store %arg6[%c0_23, %c0_24], %81 {strides = array<i32>} : memref<16x192xf32, #tpu.memory_space<vmem>>, vector<16x192xf32>,
    %cst_25 = arith.constant 0.000000e+00 : f32
    %83 = vector.broadcast %cst_25 : f32 to vector<16x64xf32>
    %c0_26 = arith.constant 0 : index
    %c0_27 = arith.constant 0 : index
    %84 = vector.load %arg7[%c0_26, %c0_27] : memref<16x64xf32, #tpu.memory_space<vmem>>, vector<16x64xf32>
    tpu.vector_store %arg7[%c0_26, %c0_27], %83 {strides = array<i32>} : memref<16x64xf32, #tpu.memory_space<vmem>>, vector<16x64xf32>,
    %cst_28 = arith.constant 0.000000e+00 : f32
    %85 = vector.broadcast %cst_28 : f32 to vector<2x64xf32>
    %c0_29 = arith.constant 0 : index
    %c0_30 = arith.constant 0 : index
    %86 = vector.load %arg6[%c0_29, %c0_30] : memref<16x192xf32, #tpu.memory_space<vmem>>, vector<2x192xf32>
    %cst_31 = arith.constant dense<0.000000e+00> : vector<2x192xf32>
    %87 = tpu.matmul %85, %2, %cst_31 {dimension_numbers = #tpu.dot_dimension_numbers<[1], [0], [0], [1], [0, 0, 1, 1], [], []>} : vector<2x64xf32>, vector<64x192xf32>, vector<2x192xf32> -> vector<2x192xf32>
    %88 = vector.broadcast %7 : vector<1x192xf32> to vector<2x192xf32>
    %89 = arith.addf %87, %88 : vector<2x192xf32>
    %90 = vector.extract_strided_slice %86 {offsets = [0, 0], sizes = [2, 64], strides = [1, 1]} : vector<2x192xf32> to vector<2x64xf32>
    %91 = vector.extract_strided_slice %89 {offsets = [0, 0], sizes = [2, 64], strides = [1, 1]} : vector<2x192xf32> to vector<2x64xf32>
    %92 = arith.addf %90, %91 : vector<2x64xf32>
    %93 = arith.negf %92 : vector<2x64xf32>
    %94 = math.exp %93 : vector<2x64xf32>
    %cst_32 = arith.constant 1.000000e+00 : f32
    %95 = vector.broadcast %cst_32 : f32 to vector<2x64xf32>
    %96 = arith.addf %95, %94 : vector<2x64xf32>
    %97 = arith.divf %95, %96 : vector<2x64xf32>
    %98 = vector.extract_strided_slice %86 {offsets = [0, 64], sizes = [2, 64], strides = [1, 1]} : vector<2x192xf32> to vector<2x64xf32>
    %99 = vector.extract_strided_slice %89 {offsets = [0, 64], sizes = [2, 64], strides = [1, 1]} : vector<2x192xf32> to vector<2x64xf32>
    %100 = arith.addf %98, %99 : vector<2x64xf32>
    %101 = arith.negf %100 : vector<2x64xf32>
    %102 = math.exp %101 : vector<2x64xf32>
    %cst_33 = arith.constant 1.000000e+00 : f32
    %103 = vector.broadcast %cst_33 : f32 to vector<2x64xf32>
    %104 = arith.addf %103, %102 : vector<2x64xf32>
    %105 = arith.divf %103, %104 : vector<2x64xf32>
    %106 = vector.extract_strided_slice %86 {offsets = [0, 128], sizes = [2, 64], strides = [1, 1]} : vector<2x192xf32> to vector<2x64xf32>
    %107 = vector.extract_strided_slice %89 {offsets = [0, 128], sizes = [2, 64], strides = [1, 1]} : vector<2x192xf32> to vector<2x64xf32>
    %108 = arith.mulf %97, %107 : vector<2x64xf32>
    %109 = arith.addf %106, %108 : vector<2x64xf32>
    %110 = math.tanh %109 : vector<2x64xf32>
    %111 = arith.mulf %105, %85 : vector<2x64xf32>
    %cst_34 = arith.constant 1.000000e+00 : f32
    %112 = vector.broadcast %cst_34 : f32 to vector<2x64xf32>
    %113 = arith.subf %112, %105 : vector<2x64xf32>
    %114 = arith.mulf %113, %110 : vector<2x64xf32>
    %115 = arith.addf %111, %114 : vector<2x64xf32>
    %c0_35 = arith.constant 0 : index
    %c0_36 = arith.constant 0 : index
    %116 = vector.load %arg7[%c0_35, %c0_36] : memref<16x64xf32, #tpu.memory_space<vmem>>, vector<2x64xf32>
    tpu.vector_store %arg7[%c0_35, %c0_36], %115 {strides = array<i32>} : memref<16x64xf32, #tpu.memory_space<vmem>>, vector<2x64xf32>,
    %c2 = arith.constant 2 : index
    %c0_37 = arith.constant 0 : index
    %117 = vector.load %arg6[%c2, %c0_37] : memref<16x192xf32, #tpu.memory_space<vmem>>, vector<2x192xf32>
    %cst_38 = arith.constant dense<0.000000e+00> : vector<2x192xf32>
    %118 = tpu.matmul %115, %2, %cst_38 {dimension_numbers = #tpu.dot_dimension_numbers<[1], [0], [0], [1], [0, 0, 1, 1], [], []>} : vector<2x64xf32>, vector<64x192xf32>, vector<2x192xf32> -> vector<2x192xf32>
    %119 = vector.broadcast %7 : vector<1x192xf32> to vector<2x192xf32>
    %120 = arith.addf %118, %119 : vector<2x192xf32>
    %121 = vector.extract_strided_slice %117 {offsets = [0, 0], sizes = [2, 64], strides = [1, 1]} : vector<2x192xf32> to vector<2x64xf32>
    %122 = vector.extract_strided_slice %120 {offsets = [0, 0], sizes = [2, 64], strides = [1, 1]} : vector<2x192xf32> to vector<2x64xf32>
    %123 = arith.addf %121, %122 : vector<2x64xf32>
    %124 = arith.negf %123 : vector<2x64xf32>
    %125 = math.exp %124 : vector<2x64xf32>
    %cst_39 = arith.constant 1.000000e+00 : f32
    %126 = vector.broadcast %cst_39 : f32 to vector<2x64xf32>
    %127 = arith.addf %126, %125 : vector<2x64xf32>
    %128 = arith.divf %126, %127 : vector<2x64xf32>
    %129 = vector.extract_strided_slice %117 {offsets = [0, 64], sizes = [2, 64], strides = [1, 1]} : vector<2x192xf32> to vector<2x64xf32>
    %130 = vector.extract_strided_slice %120 {offsets = [0, 64], sizes = [2, 64], strides = [1, 1]} : vector<2x192xf32> to vector<2x64xf32>
    %131 = arith.addf %129, %130 : vector<2x64xf32>
    %132 = arith.negf %131 : vector<2x64xf32>
    %133 = math.exp %132 : vector<2x64xf32>
    %cst_40 = arith.constant 1.000000e+00 : f32
    %134 = vector.broadcast %cst_40 : f32 to vector<2x64xf32>
    %135 = arith.addf %134, %133 : vector<2x64xf32>
    %136 = arith.divf %134, %135 : vector<2x64xf32>
    %137 = vector.extract_strided_slice %117 {offsets = [0, 128], sizes = [2, 64], strides = [1, 1]} : vector<2x192xf32> to vector<2x64xf32>
    %138 = vector.extract_strided_slice %120 {offsets = [0, 128], sizes = [2, 64], strides = [1, 1]} : vector<2x192xf32> to vector<2x64xf32>
    %139 = arith.mulf %128, %138 : vector<2x64xf32>
    %140 = arith.addf %137, %139 : vector<2x64xf32>
    %141 = math.tanh %140 : vector<2x64xf32>
    %142 = arith.mulf %136, %115 : vector<2x64xf32>
    %cst_41 = arith.constant 1.000000e+00 : f32
    %143 = vector.broadcast %cst_41 : f32 to vector<2x64xf32>
    %144 = arith.subf %143, %136 : vector<2x64xf32>
    %145 = arith.mulf %144, %141 : vector<2x64xf32>
    %146 = arith.addf %142, %145 : vector<2x64xf32>
    %c2_42 = arith.constant 2 : index
    %c0_43 = arith.constant 0 : index
    %147 = vector.load %arg7[%c2_42, %c0_43] : memref<16x64xf32, #tpu.memory_space<vmem>>, vector<2x64xf32>
    tpu.vector_store %arg7[%c2_42, %c0_43], %146 {strides = array<i32>} : memref<16x64xf32, #tpu.memory_space<vmem>>, vector<2x64xf32>,
    %c4 = arith.constant 4 : index
    %c0_44 = arith.constant 0 : index
    %148 = vector.load %arg6[%c4, %c0_44] : memref<16x192xf32, #tpu.memory_space<vmem>>, vector<2x192xf32>
    %cst_45 = arith.constant dense<0.000000e+00> : vector<2x192xf32>
    %149 = tpu.matmul %146, %2, %cst_45 {dimension_numbers = #tpu.dot_dimension_numbers<[1], [0], [0], [1], [0, 0, 1, 1], [], []>} : vector<2x64xf32>, vector<64x192xf32>, vector<2x192xf32> -> vector<2x192xf32>
    %150 = vector.broadcast %7 : vector<1x192xf32> to vector<2x192xf32>
    %151 = arith.addf %149, %150 : vector<2x192xf32>
    %152 = vector.extract_strided_slice %148 {offsets = [0, 0], sizes = [2, 64], strides = [1, 1]} : vector<2x192xf32> to vector<2x64xf32>
    %153 = vector.extract_strided_slice %151 {offsets = [0, 0], sizes = [2, 64], strides = [1, 1]} : vector<2x192xf32> to vector<2x64xf32>
    %154 = arith.addf %152, %153 : vector<2x64xf32>
    %155 = arith.negf %154 : vector<2x64xf32>
    %156 = math.exp %155 : vector<2x64xf32>
    %cst_46 = arith.constant 1.000000e+00 : f32
    %157 = vector.broadcast %cst_46 : f32 to vector<2x64xf32>
    %158 = arith.addf %157, %156 : vector<2x64xf32>
    %159 = arith.divf %157, %158 : vector<2x64xf32>
    %160 = vector.extract_strided_slice %148 {offsets = [0, 64], sizes = [2, 64], strides = [1, 1]} : vector<2x192xf32> to vector<2x64xf32>
    %161 = vector.extract_strided_slice %151 {offsets = [0, 64], sizes = [2, 64], strides = [1, 1]} : vector<2x192xf32> to vector<2x64xf32>
    %162 = arith.addf %160, %161 : vector<2x64xf32>
    %163 = arith.negf %162 : vector<2x64xf32>
    %164 = math.exp %163 : vector<2x64xf32>
    %cst_47 = arith.constant 1.000000e+00 : f32
    %165 = vector.broadcast %cst_47 : f32 to vector<2x64xf32>
    %166 = arith.addf %165, %164 : vector<2x64xf32>
    %167 = arith.divf %165, %166 : vector<2x64xf32>
    %168 = vector.extract_strided_slice %148 {offsets = [0, 128], sizes = [2, 64], strides = [1, 1]} : vector<2x192xf32> to vector<2x64xf32>
    %169 = vector.extract_strided_slice %151 {offsets = [0, 128], sizes = [2, 64], strides = [1, 1]} : vector<2x192xf32> to vector<2x64xf32>
    %170 = arith.mulf %159, %169 : vector<2x64xf32>
    %171 = arith.addf %168, %170 : vector<2x64xf32>
    %172 = math.tanh %171 : vector<2x64xf32>
    %173 = arith.mulf %167, %146 : vector<2x64xf32>
    %cst_48 = arith.constant 1.000000e+00 : f32
    %174 = vector.broadcast %cst_48 : f32 to vector<2x64xf32>
    %175 = arith.subf %174, %167 : vector<2x64xf32>
    %176 = arith.mulf %175, %172 : vector<2x64xf32>
    %177 = arith.addf %173, %176 : vector<2x64xf32>
    %c4_49 = arith.constant 4 : index
    %c0_50 = arith.constant 0 : index
    %178 = vector.load %arg7[%c4_49, %c0_50] : memref<16x64xf32, #tpu.memory_space<vmem>>, vector<2x64xf32>
    tpu.vector_store %arg7[%c4_49, %c0_50], %177 {strides = array<i32>} : memref<16x64xf32, #tpu.memory_space<vmem>>, vector<2x64xf32>,
    %c6 = arith.constant 6 : index
    %c0_51 = arith.constant 0 : index
    %179 = vector.load %arg6[%c6, %c0_51] : memref<16x192xf32, #tpu.memory_space<vmem>>, vector<2x192xf32>
    %cst_52 = arith.constant dense<0.000000e+00> : vector<2x192xf32>
    %180 = tpu.matmul %177, %2, %cst_52 {dimension_numbers = #tpu.dot_dimension_numbers<[1], [0], [0], [1], [0, 0, 1, 1], [], []>} : vector<2x64xf32>, vector<64x192xf32>, vector<2x192xf32> -> vector<2x192xf32>
    %181 = vector.broadcast %7 : vector<1x192xf32> to vector<2x192xf32>
    %182 = arith.addf %180, %181 : vector<2x192xf32>
    %183 = vector.extract_strided_slice %179 {offsets = [0, 0], sizes = [2, 64], strides = [1, 1]} : vector<2x192xf32> to vector<2x64xf32>
    %184 = vector.extract_strided_slice %182 {offsets = [0, 0], sizes = [2, 64], strides = [1, 1]} : vector<2x192xf32> to vector<2x64xf32>
    %185 = arith.addf %183, %184 : vector<2x64xf32>
    %186 = arith.negf %185 : vector<2x64xf32>
    %187 = math.exp %186 : vector<2x64xf32>
    %cst_53 = arith.constant 1.000000e+00 : f32
    %188 = vector.broadcast %cst_53 : f32 to vector<2x64xf32>
    %189 = arith.addf %188, %187 : vector<2x64xf32>
    %190 = arith.divf %188, %189 : vector<2x64xf32>
    %191 = vector.extract_strided_slice %179 {offsets = [0, 64], sizes = [2, 64], strides = [1, 1]} : vector<2x192xf32> to vector<2x64xf32>
    %192 = vector.extract_strided_slice %182 {offsets = [0, 64], sizes = [2, 64], strides = [1, 1]} : vector<2x192xf32> to vector<2x64xf32>
    %193 = arith.addf %191, %192 : vector<2x64xf32>
    %194 = arith.negf %193 : vector<2x64xf32>
    %195 = math.exp %194 : vector<2x64xf32>
    %cst_54 = arith.constant 1.000000e+00 : f32
    %196 = vector.broadcast %cst_54 : f32 to vector<2x64xf32>
    %197 = arith.addf %196, %195 : vector<2x64xf32>
    %198 = arith.divf %196, %197 : vector<2x64xf32>
    %199 = vector.extract_strided_slice %179 {offsets = [0, 128], sizes = [2, 64], strides = [1, 1]} : vector<2x192xf32> to vector<2x64xf32>
    %200 = vector.extract_strided_slice %182 {offsets = [0, 128], sizes = [2, 64], strides = [1, 1]} : vector<2x192xf32> to vector<2x64xf32>
    %201 = arith.mulf %190, %200 : vector<2x64xf32>
    %202 = arith.addf %199, %201 : vector<2x64xf32>
    %203 = math.tanh %202 : vector<2x64xf32>
    %204 = arith.mulf %198, %177 : vector<2x64xf32>
    %cst_55 = arith.constant 1.000000e+00 : f32
    %205 = vector.broadcast %cst_55 : f32 to vector<2x64xf32>
    %206 = arith.subf %205, %198 : vector<2x64xf32>
    %207 = arith.mulf %206, %203 : vector<2x64xf32>
    %208 = arith.addf %204, %207 : vector<2x64xf32>
    %c6_56 = arith.constant 6 : index
    %c0_57 = arith.constant 0 : index
    %209 = vector.load %arg7[%c6_56, %c0_57] : memref<16x64xf32, #tpu.memory_space<vmem>>, vector<2x64xf32>
    tpu.vector_store %arg7[%c6_56, %c0_57], %208 {strides = array<i32>} : memref<16x64xf32, #tpu.memory_space<vmem>>, vector<2x64xf32>,
    %c8 = arith.constant 8 : index
    %c0_58 = arith.constant 0 : index
    %210 = vector.load %arg6[%c8, %c0_58] : memref<16x192xf32, #tpu.memory_space<vmem>>, vector<2x192xf32>
    %cst_59 = arith.constant dense<0.000000e+00> : vector<2x192xf32>
    %211 = tpu.matmul %208, %2, %cst_59 {dimension_numbers = #tpu.dot_dimension_numbers<[1], [0], [0], [1], [0, 0, 1, 1], [], []>} : vector<2x64xf32>, vector<64x192xf32>, vector<2x192xf32> -> vector<2x192xf32>
    %212 = vector.broadcast %7 : vector<1x192xf32> to vector<2x192xf32>
    %213 = arith.addf %211, %212 : vector<2x192xf32>
    %214 = vector.extract_strided_slice %210 {offsets = [0, 0], sizes = [2, 64], strides = [1, 1]} : vector<2x192xf32> to vector<2x64xf32>
    %215 = vector.extract_strided_slice %213 {offsets = [0, 0], sizes = [2, 64], strides = [1, 1]} : vector<2x192xf32> to vector<2x64xf32>
    %216 = arith.addf %214, %215 : vector<2x64xf32>
    %217 = arith.negf %216 : vector<2x64xf32>
    %218 = math.exp %217 : vector<2x64xf32>
    %cst_60 = arith.constant 1.000000e+00 : f32
    %219 = vector.broadcast %cst_60 : f32 to vector<2x64xf32>
    %220 = arith.addf %219, %218 : vector<2x64xf32>
    %221 = arith.divf %219, %220 : vector<2x64xf32>
    %222 = vector.extract_strided_slice %210 {offsets = [0, 64], sizes = [2, 64], strides = [1, 1]} : vector<2x192xf32> to vector<2x64xf32>
    %223 = vector.extract_strided_slice %213 {offsets = [0, 64], sizes = [2, 64], strides = [1, 1]} : vector<2x192xf32> to vector<2x64xf32>
    %224 = arith.addf %222, %223 : vector<2x64xf32>
    %225 = arith.negf %224 : vector<2x64xf32>
    %226 = math.exp %225 : vector<2x64xf32>
    %cst_61 = arith.constant 1.000000e+00 : f32
    %227 = vector.broadcast %cst_61 : f32 to vector<2x64xf32>
    %228 = arith.addf %227, %226 : vector<2x64xf32>
    %229 = arith.divf %227, %228 : vector<2x64xf32>
    %230 = vector.extract_strided_slice %210 {offsets = [0, 128], sizes = [2, 64], strides = [1, 1]} : vector<2x192xf32> to vector<2x64xf32>
    %231 = vector.extract_strided_slice %213 {offsets = [0, 128], sizes = [2, 64], strides = [1, 1]} : vector<2x192xf32> to vector<2x64xf32>
    %232 = arith.mulf %221, %231 : vector<2x64xf32>
    %233 = arith.addf %230, %232 : vector<2x64xf32>
    %234 = math.tanh %233 : vector<2x64xf32>
    %235 = arith.mulf %229, %208 : vector<2x64xf32>
    %cst_62 = arith.constant 1.000000e+00 : f32
    %236 = vector.broadcast %cst_62 : f32 to vector<2x64xf32>
    %237 = arith.subf %236, %229 : vector<2x64xf32>
    %238 = arith.mulf %237, %234 : vector<2x64xf32>
    %239 = arith.addf %235, %238 : vector<2x64xf32>
    %c8_63 = arith.constant 8 : index
    %c0_64 = arith.constant 0 : index
    %240 = vector.load %arg7[%c8_63, %c0_64] : memref<16x64xf32, #tpu.memory_space<vmem>>, vector<2x64xf32>
    tpu.vector_store %arg7[%c8_63, %c0_64], %239 {strides = array<i32>} : memref<16x64xf32, #tpu.memory_space<vmem>>, vector<2x64xf32>,
    %c10 = arith.constant 10 : index
    %c0_65 = arith.constant 0 : index
    %241 = vector.load %arg6[%c10, %c0_65] : memref<16x192xf32, #tpu.memory_space<vmem>>, vector<2x192xf32>
    %cst_66 = arith.constant dense<0.000000e+00> : vector<2x192xf32>
    %242 = tpu.matmul %239, %2, %cst_66 {dimension_numbers = #tpu.dot_dimension_numbers<[1], [0], [0], [1], [0, 0, 1, 1], [], []>} : vector<2x64xf32>, vector<64x192xf32>, vector<2x192xf32> -> vector<2x192xf32>
    %243 = vector.broadcast %7 : vector<1x192xf32> to vector<2x192xf32>
    %244 = arith.addf %242, %243 : vector<2x192xf32>
    %245 = vector.extract_strided_slice %241 {offsets = [0, 0], sizes = [2, 64], strides = [1, 1]} : vector<2x192xf32> to vector<2x64xf32>
    %246 = vector.extract_strided_slice %244 {offsets = [0, 0], sizes = [2, 64], strides = [1, 1]} : vector<2x192xf32> to vector<2x64xf32>
    %247 = arith.addf %245, %246 : vector<2x64xf32>
    %248 = arith.negf %247 : vector<2x64xf32>
    %249 = math.exp %248 : vector<2x64xf32>
    %cst_67 = arith.constant 1.000000e+00 : f32
    %250 = vector.broadcast %cst_67 : f32 to vector<2x64xf32>
    %251 = arith.addf %250, %249 : vector<2x64xf32>
    %252 = arith.divf %250, %251 : vector<2x64xf32>
    %253 = vector.extract_strided_slice %241 {offsets = [0, 64], sizes = [2, 64], strides = [1, 1]} : vector<2x192xf32> to vector<2x64xf32>
    %254 = vector.extract_strided_slice %244 {offsets = [0, 64], sizes = [2, 64], strides = [1, 1]} : vector<2x192xf32> to vector<2x64xf32>
    %255 = arith.addf %253, %254 : vector<2x64xf32>
    %256 = arith.negf %255 : vector<2x64xf32>
    %257 = math.exp %256 : vector<2x64xf32>
    %cst_68 = arith.constant 1.000000e+00 : f32
    %258 = vector.broadcast %cst_68 : f32 to vector<2x64xf32>
    %259 = arith.addf %258, %257 : vector<2x64xf32>
    %260 = arith.divf %258, %259 : vector<2x64xf32>
    %261 = vector.extract_strided_slice %241 {offsets = [0, 128], sizes = [2, 64], strides = [1, 1]} : vector<2x192xf32> to vector<2x64xf32>
    %262 = vector.extract_strided_slice %244 {offsets = [0, 128], sizes = [2, 64], strides = [1, 1]} : vector<2x192xf32> to vector<2x64xf32>
    %263 = arith.mulf %252, %262 : vector<2x64xf32>
    %264 = arith.addf %261, %263 : vector<2x64xf32>
    %265 = math.tanh %264 : vector<2x64xf32>
    %266 = arith.mulf %260, %239 : vector<2x64xf32>
    %cst_69 = arith.constant 1.000000e+00 : f32
    %267 = vector.broadcast %cst_69 : f32 to vector<2x64xf32>
    %268 = arith.subf %267, %260 : vector<2x64xf32>
    %269 = arith.mulf %268, %265 : vector<2x64xf32>
    %270 = arith.addf %266, %269 : vector<2x64xf32>
    %c10_70 = arith.constant 10 : index
    %c0_71 = arith.constant 0 : index
    %271 = vector.load %arg7[%c10_70, %c0_71] : memref<16x64xf32, #tpu.memory_space<vmem>>, vector<2x64xf32>
    tpu.vector_store %arg7[%c10_70, %c0_71], %270 {strides = array<i32>} : memref<16x64xf32, #tpu.memory_space<vmem>>, vector<2x64xf32>,
    %c0_72 = arith.constant 0 : index
    %c0_73 = arith.constant 0 : index
    %272 = vector.load %arg7[%c0_72, %c0_73] : memref<16x64xf32, #tpu.memory_space<vmem>>, vector<16x64xf32>
    %273 = tpu.concatenate %13, %78, %272 in 1 : vector<16x64xf32>, vector<16x64xf32>, vector<16x64xf32> -> vector<16x192xf32>
    %cst_74 = arith.constant dense<0.000000e+00> : vector<16x96xf32>
    %274 = tpu.matmul %273, %3, %cst_74 {dimension_numbers = #tpu.dot_dimension_numbers<[1], [0], [0], [1], [0, 0, 1, 1], [], []>} : vector<16x192xf32>, vector<192x96xf32>, vector<16x96xf32> -> vector<16x96xf32>
    %275 = vector.broadcast %8 : vector<1x96xf32> to vector<16x96xf32>
    %276 = arith.addf %274, %275 : vector<16x96xf32>
    %cst_75 = arith.constant dense<0.000000e+00> : vector<16x128xf32>
    %277 = tpu.matmul %276, %4, %cst_75 {dimension_numbers = #tpu.dot_dimension_numbers<[1], [0], [0], [1], [0, 0, 1, 1], [], []>} : vector<16x96xf32>, vector<96x128xf32>, vector<16x128xf32> -> vector<16x128xf32>
    %278 = vector.broadcast %9 : vector<1x128xf32> to vector<16x128xf32>
    %279 = arith.addf %277, %278 : vector<16x128xf32>
    %c0_76 = arith.constant 0 : index
    %c0_77 = arith.constant 0 : index
    %c0_78 = arith.constant 0 : index
    %280 = vector.load %arg4[%c0_76, %c0_77, %c0_78] : memref<1x16x128xf32, #tpu.memory_space<vmem>>, vector<1x16x128xf32>
    %281 = vector.shape_cast %280 : vector<1x16x128xf32> to vector<16x128xf32>
    %282 = vector.shape_cast %279 : vector<16x128xf32> to vector<1x16x128xf32>
    tpu.vector_store %arg4[%c0_76, %c0_77, %c0_78], %282 {strides = array<i32>} : memref<1x16x128xf32, #tpu.memory_space<vmem>>, vector<1x16x128xf32>,
    %283 = tpu.iota {dimensions = array<i32: 1>} : vector<16x128xi32>
    %c6_i32 = arith.constant 6 : i32
    %284 = vector.broadcast %c6_i32 : i32 to vector<16x128xi32>
    %285 = arith.cmpi slt, %283, %284 : vector<16x128xi32>
    %cst_79 = arith.constant -1.000000e+30 : f32
    %286 = vector.broadcast %cst_79 : f32 to vector<16x128xf32>
    %287 = arith.select %285, %279, %286 : vector<16x128xi1>, vector<16x128xf32>
    %cst_80 = arith.constant dense<0xFF800000> : vector<16xf32>
    %288 = vector.multi_reduction <maximumf>, %287, %cst_80 [1] : vector<16x128xf32> to vector<16xf32>
    %289 = vector.shape_cast %288 : vector<16xf32> to vector<16x1xf32>
    %290 = vector.broadcast %289 : vector<16x1xf32> to vector<16x128xf32>
    %291 = arith.subf %287, %290 : vector<16x128xf32>
    %292 = math.exp %291 : vector<16x128xf32>
    %cst_81 = arith.constant dense<0.000000e+00> : vector<16xf32>
    %293 = vector.multi_reduction <add>, %292, %cst_81 [1] : vector<16x128xf32> to vector<16xf32>
    %294 = vector.shape_cast %293 : vector<16xf32> to vector<16x1xf32>
    %295 = math.log %294 : vector<16x1xf32>
    %296 = arith.addf %295, %289 : vector<16x1xf32>
    %297 = arith.sitofp %283 : vector<16x128xi32> to vector<16x128xf32>
    %298 = vector.broadcast %17 : vector<16x1xf32> to vector<16x128xf32>
    %299 = arith.cmpf oeq, %297, %298 : vector<16x128xf32>
    %300 = arith.extui %299 : vector<16x128xi1> to vector<16x128xi32>
    %301 = arith.sitofp %300 : vector<16x128xi32> to vector<16x128xf32>
    %302 = arith.mulf %279, %301 : vector<16x128xf32>
    %cst_82 = arith.constant dense<0.000000e+00> : vector<16xf32>
    %303 = vector.multi_reduction <add>, %302, %cst_82 [1] : vector<16x128xf32> to vector<16xf32>
    %304 = vector.shape_cast %303 : vector<16xf32> to vector<16x1xf32>
    %305 = arith.subf %296, %304 : vector<16x1xf32>
    %cst_83 = arith.constant dense<0.000000e+00> : vector<2xf32>
    %306 = vector.multi_reduction <add>, %18, %cst_83 [0] : vector<16x2xf32> to vector<2xf32>
    %307 = vector.shape_cast %306 : vector<2xf32> to vector<1x2xf32>
    %cst_84 = arith.constant 1.000000e+00 : f32
    %308 = vector.broadcast %cst_84 : f32 to vector<1x2xf32>
    %309 = arith.maximumf %307, %308 : vector<1x2xf32>
    %310 = vector.broadcast %305 : vector<16x1xf32> to vector<16x2xf32>
    %311 = arith.mulf %310, %18 : vector<16x2xf32>
    %cst_85 = arith.constant dense<0.000000e+00> : vector<2xf32>
    %312 = vector.multi_reduction <add>, %311, %cst_85 [0] : vector<16x2xf32> to vector<2xf32>
    %313 = vector.shape_cast %312 : vector<2xf32> to vector<1x2xf32>
    %314 = arith.divf %313, %309 : vector<1x2xf32>
    %c0_86 = arith.constant 0 : index
    %c0_87 = arith.constant 0 : index
    %c0_88 = arith.constant 0 : index
    %315 = vector.load %arg5[%c0_86, %c0_87, %c0_88] : memref<1x1x2xf32, #tpu.memory_space<vmem>>, vector<1x1x2xf32>
    %316 = vector.shape_cast %315 : vector<1x1x2xf32> to vector<1x2xf32>
    %317 = vector.shape_cast %314 : vector<1x2xf32> to vector<1x1x2xf32>
    tpu.vector_store %arg5[%c0_86, %c0_87, %c0_88], %317 {strides = array<i32>} : memref<1x1x2xf32, #tpu.memory_space<vmem>>, vector<1x1x2xf32>,
    return
  }
  func.func @transform_0(%arg0: i32) -> (i32, i32, i32) {
    %c0_i32 = arith.constant 0 : i32
    %c0_i32_0 = arith.constant 0 : i32
    %c0_i32_1 = arith.constant 0 : i32
    return %arg0, %c0_i32, %c0_i32_0 : i32, i32, i32
  }
  func.func @transform_1(%arg0: i32) -> (i32, i32, i32) {
    %c0_i32 = arith.constant 0 : i32
    %c0_i32_0 = arith.constant 0 : i32
    %c0_i32_1 = arith.constant 0 : i32
    return %arg0, %c0_i32, %c0_i32_0 : i32, i32, i32
  }
  func.func @transform_2(%arg0: i32) -> (i32, i32) {
    %c0_i32 = arith.constant 0 : i32
    %c0_i32_0 = arith.constant 0 : i32
    %c0_i32_1 = arith.constant 0 : i32
    return %c0_i32, %c0_i32_0 : i32, i32
  }
  func.func @transform_3(%arg0: i32) -> (i32, i32, i32) {
    %c0_i32 = arith.constant 0 : i32
    %c0_i32_0 = arith.constant 0 : i32
    %c0_i32_1 = arith.constant 0 : i32
    return %arg0, %c0_i32, %c0_i32_0 : i32, i32, i32
  }
  func.func @transform_4(%arg0: i32) -> (i32, i32, i32) {
    %c0_i32 = arith.constant 0 : i32
    %c0_i32_0 = arith.constant 0 : i32
    %c0_i32_1 = arith.constant 0 : i32
    return %arg0, %c0_i32, %c0_i32_0 : i32, i32, i32
  }
}

</mosaic_0001>

<llo_original>
// kernel: _forward_core.1
$region0: #{_forward_core.1}
  #allocation0 [shape = 'u32[]', space=smem, size = 0x4, offset = 0x4, fixed_abs, tag = 'smem constant byte address 0x4 - core index']
  #allocation1 [shape = 'u32[144,128]{1,0:T(1,128)}', space=vmem, size = 0x12000, scoped, tag = 'internal scratch']
  #allocation2 [shape = 'f32[16,192]{1,0:T(8,128)}', space=vmem, size = 0x4000, scoped, tag = 'scratch operand']
  #allocation3 [shape = 'f32[16,64]{1,0:T(8,128)}', space=vmem, size = 0x2000, scoped, tag = 'scratch operand']
  %s0 = inlined_call_operand.vmem [shape: f32[1,80,64], index: 0, kind: input, shape index: {}]
  %s1 = inlined_call_operand.vmem [shape: f32[1,64,5], index: 1, kind: input, shape index: {}]
  %s2 = inlined_call_operand.vmem [shape: f32[488,192], index: 2, kind: input, shape index: {}]
  %s3 = inlined_call_operand.vmem [shape: f32[1,16,128], index: 3, kind: output, shape index: {0}]
  %s4 = inlined_call_operand.vmem [shape: f32[1,1,2], index: 4, kind: output, shape index: {1}]
  %5 = xla_tuple %s3, %s4
  %s6 = sld [smem:[#allocation0]]
  $region30: #{_forward_core.1} parent=0
    _
  %s8 = ssub.s32 1, %s6
  %s9 = scalar_select 0, %s8, %s6
  // Predicated region
  $region2: #{_forward_core.1} parent=0 // pred_check
    _
  $region3: #{_forward_core.1} parent=0 // pred_check_branch
    %11 = sbr.rel (0) target = $region5
  $region4: #{_forward_core.1} parent=0 // pred_region
    _
  $region5: #{_forward_core.1} parent=0 // pred_fallthru
    _
  // Predicated region
  $region6: #{_forward_core.1} parent=0 // pred_check
    _
  $region7: #{_forward_core.1} parent=0 // pred_check_branch
    %13 = sbr.rel (0) target = $region9
  $region8: #{_forward_core.1} parent=0 // pred_region
    _
  $region9: #{_forward_core.1} parent=0 // pred_fallthru
    _
  // Predicated region
  $region10: #{_forward_core.1} parent=0 // pred_check
    _
  $region11: #{_forward_core.1} parent=0 // pred_check_branch
    %15 = sbr.rel (0) target = $region13
  $region12: #{_forward_core.1} parent=0 // pred_region
    _
  $region13: #{_forward_core.1} parent=0 // pred_fallthru
    _
  %v16 = vld [vmem:[%s2] sm:$0xff]
  %v17 = vld [vmem:[%s2 + $0x10] sm:$0xff]
  %v18 = vld [vmem:[%s2 + $0x20] sm:$0xff]
  %v19 = vld [vmem:[%s2 + $0x30] sm:$0xff]
  %v20 = vld [vmem:[%s2 + $0x40] sm:$0xff]
  %v21 = vld [vmem:[%s2 + $0x50] sm:$0xff]
  %v22 = vld [vmem:[%s2 + $0x60] sm:$0xff]
  %v23 = vld [vmem:[%s2 + $0x70] sm:$0xff]
  %v24 = vld [vmem:[%s2 + $0x80] sm:$0xff]
  %v25 = vld [vmem:[%s2 + $0x88] sm:$0xff]
  %v26 = vld [vmem:[%s2 + $0x90] sm:$0xff]
  %v27 = vld [vmem:[%s2 + $0x98] sm:$0xff]
  %v28 = vld [vmem:[%s2 + $0xa0] sm:$0xff]
  %v29 = vld [vmem:[%s2 + $0xa8] sm:$0xff]
  %v30 = vld [vmem:[%s2 + $0xb0] sm:$0xff]
  %v31 = vld [vmem:[%s2 + $0xb8] sm:$0xff]
  %v32 = vld [vmem:[%s2 + $0xc0] sm:$0xff]
  %v33 = vld [vmem:[%s2 + $0xc8] sm:$0xff]
  %v34 = vld [vmem:[%s2 + $0xd0] sm:$0xff]
  %v35 = vld [vmem:[%s2 + $0xd8] sm:$0xff]
  %v36 = vld [vmem:[%s2 + $0xe0] sm:$0xff]
  %v37 = vld [vmem:[%s2 + $0xe8] sm:$0xff]
  %v38 = vld [vmem:[%s2 + $0xf0] sm:$0xff]
  %v39 = vld [vmem:[%s2 + $0xf8] sm:$0xff]
  %v40 = vld [vmem:[%s2 + $0x100] sm:$0xff]
  %v41 = vld [vmem:[%s2 + $0x108] sm:$0xff]
  %v42 = vld [vmem:[%s2 + $0x110] sm:$0xff]
  %v43 = vld [vmem:[%s2 + $0x118] sm:$0xff]
  %v44 = vld [vmem:[%s2 + $0x120] sm:$0xff]
  %v45 = vld [vmem:[%s2 + $0x128] sm:$0xff]
  %v46 = vld [vmem:[%s2 + $0x130] sm:$0xff]
  %v47 = vld [vmem:[%s2 + $0x138] sm:$0xff]
  %v48 = vld [vmem:[%s2 + $0x140] sm:$0xff]
  %v49 = vld [vmem:[%s2 + $0x148] sm:$0xff]
  %v50 = vld [vmem:[%s2 + $0x150] sm:$0xff]
  %v51 = vld [vmem:[%s2 + $0x158] sm:$0xff]
  %v52 = vld [vmem:[%s2 + $0x160] sm:$0xff]
  %v53 = vld [vmem:[%s2 + $0x168] sm:$0xff]
  %v54 = vld [vmem:[%s2 + $0x170] sm:$0xff]
  %v55 = vld [vmem:[%s2 + $0x178] sm:$0xff]
  %v56 = vld [vmem:[%s2 + $0x180] sm:$0xff]
  %v57 = vld [vmem:[%s2 + $0x190] sm:$0xff]
  %v58 = vld [vmem:[%s2 + $0x1a0] sm:$0xff]
  %v59 = vld [vmem:[%s2 + $0x1b0] sm:$0xff]
  %v60 = vld [vmem:[%s2 + $0x1c0] sm:$0xff]
  %v61 = vld [vmem:[%s2 + $0x1d0] sm:$0xff]
  %v62 = vld [vmem:[%s2 + $0x1e0] sm:$0xff]
  %v63 = vld [vmem:[%s2 + $0x1f0] sm:$0xff]
  %v64 = vld [vmem:[%s2 + $0x200] sm:$0xff]
  %v65 = vld [vmem:[%s2 + $0x210] sm:$0xff]
  %v66 = vld [vmem:[%s2 + $0x220] sm:$0xff]
  %v67 = vld [vmem:[%s2 + $0x230] sm:$0xff]
  %v68 = vld [vmem:[%s2 + $0x240] sm:$0xff]
  %v69 = vld [vmem:[%s2 + $0x250] sm:$0xff]
  %v70 = vld [vmem:[%s2 + $0x260] sm:$0xff]
  %v71 = vld [vmem:[%s2 + $0x270] sm:$0xff]
  %v72 = vld [vmem:[%s2 + $0x280] sm:$0xff]
  %v73 = vld [vmem:[%s2 + $0x290] sm:$0xff]
  %v74 = vld [vmem:[%s2 + $0x2a0] sm:$0xff]
  %v75 = vld [vmem:[%s2 + $0x2b0] sm:$0xff]
  %v76 = vld [vmem:[%s2 + $0x2c0] sm:$0xff]
  %v77 = vld [vmem:[%s2 + $0x2d0] sm:$0xff]
  %v78 = vld [vmem:[%s2 + $0x2e0] sm:$0xff]
  %v79 = vld [vmem:[%s2 + $0x2f0] sm:$0xff]
  %v80 = vld [vmem:[%s2 + $0x300] sm:$0xff]
  %v81 = vld [vmem:[%s2 + $0x310] sm:$0xff]
  %v82 = vld [vmem:[%s2 + $0x320] sm:$0xff]
  %v83 = vld [vmem:[%s2 + $0x330] sm:$0xff]
  %v84 = vld [vmem:[%s2 + $0x340] sm:$0xff]
  %v85 = vld [vmem:[%s2 + $0x350] sm:$0xff]
  %v86 = vld [vmem:[%s2 + $0x360] sm:$0xff]
  %v87 = vld [vmem:[%s2 + $0x370] sm:$0xff]
  %v88 = vld [vmem:[%s2 + $0x380] sm:$0xff]
  %v89 = vld [vmem:[%s2 + $0x390] sm:$0xff]
  %v90 = vld [vmem:[%s2 + $0x3a0] sm:$0xff]
  %v91 = vld [vmem:[%s2 + $0x3b0] sm:$0xff]
  %v92 = vld [vmem:[%s2 + $0x3c0] ss:$0 sm:$0xff]
  %s93 = scalar_lea.vmem %s2, 961
  %v94 = vld [vmem:[%s93] ss:$8 sm:$0x3]
  %s95 = scalar_lea.vmem %s2, 962
  %v96 = vld [vmem:[%s95] ss:$8 sm:$0x3]
  %v97 = vld [vmem:[%s2 + $0x3c3] ss:$0 sm:$0xff]
  %v98 = vld [vmem:[%s2 + $0x3c4] ss:$0 sm:$0xff]
  %v99 = vld [vmem:[%s0] sm:$0xff]
  %v100 = vld [vmem:[%s0 + $0x8] sm:$0xff]
  %v101 = vld [vmem:[%s0 + $0x10] sm:$0xff]
  %v102 = vld [vmem:[%s0 + $0x18] sm:$0xff]
  %v103 = vld [vmem:[%s0 + $0x20] sm:$0xff]
  %v104 = vld [vmem:[%s0 + $0x28] sm:$0xff]
  %v105 = vld [vmem:[%s0 + $0x30] sm:$0xff]
  %v106 = vld [vmem:[%s0 + $0x38] sm:$0xff]
  %v107 = vld [vmem:[%s0 + $0x40] sm:$0xff]
  %v108 = vld [vmem:[%s0 + $0x48] sm:$0xff]
  %v109 = vld [vmem:[%s1] sm:$0xff]
  %v110 = vld [vmem:[%s1 + $0x8] sm:$0xff]
  %v111 = vld [vmem:[%s1 + $0x10] sm:$0xff]
  %v112 = vld [vmem:[%s1 + $0x18] sm:$0xff]
  %v113 = vld [vmem:[%s1 + $0x20] sm:$0xff]
  %v114 = vld [vmem:[%s1 + $0x28] sm:$0xff]
  %v115 = vld [vmem:[%s1 + $0x30] sm:$0xff]
  %v116 = vld [vmem:[%s1 + $0x38] sm:$0xff]
  %vm117 = vcmask 523264
  %v119 = vsel %vm117, %v99, 0
  %v122 = vsel %vm117, %v100, 0
  %v125 = vsel %vm117, %v101, 0
  %v128 = vsel %vm117, %v102, 0
  %v131 = vsel %vm117, %v103, 0
  %v134 = vsel %vm117, %v104, 0
  %v137 = vsel %vm117, %v105, 0
  %v140 = vsel %vm117, %v106, 0
  %142 = vmatprep.subr.mxu0 0.0
  %143 = vmatpush1.msra.mxu0 %v16
  %144 = vmatprep.subr.mxu0 0.0
  %145 = vmatpush1.msra.mxu0 %v17
  %146 = vmatprep.subr.mxu0 0.0
  %147 = vmatpush1.msra.mxu0 %v18
  %148 = vmatprep.subr.mxu0 0.0
  %149 = vmatpush1.msra.mxu0 %v19
  %150 = vmatprep.subr.mxu0 0.0
  %151 = vmatpush1.msra.mxu0 %v20
  %152 = vmatprep.subr.mxu0 0.0
  %153 = vmatpush1.msra.mxu0 %v21
  %154 = vmatprep.subr.mxu0 0.0
  %155 = vmatpush1.msra.mxu0 %v22
  %156 = vmatprep.subr.mxu0 0.0
  %157 = vmatpush1.msra.mxu0 %v23
  %158 = vmatprep.subr.mxu0 0.0
  %159 = vmatpush1.msra.mxu0 0.0
  %160 = vmatprep.subr.mxu0 0.0
  %161 = vmatpush1.msra.mxu0 0.0
  %162 = vmatprep.subr.mxu0 0.0
  %163 = vmatpush1.msra.mxu0 0.0
  %164 = vmatprep.subr.mxu0 0.0
  %165 = vmatpush1.msra.mxu0 0.0
  %166 = vmatprep.subr.mxu0 0.0
  %167 = vmatpush1.msra.mxu0 0.0
  %168 = vmatprep.subr.mxu0 0.0
  %169 = vmatpush1.msra.mxu0 0.0
  %170 = vmatprep.subr.mxu0 0.0
  %171 = vmatpush1.msra.mxu0 0.0
  %172 = vmatprep.subr.mxu0 0.0
  %173 = vmatpush1.msra.mxu0 0.0
  %174 = vmatprep.subr.mxu0 0.0
  %175 = vmatpush1.msra.mxu0 0.0
  %176 = vmatprep.subr.mxu0 0.0
  %177 = vmatpush1.msra.mxu0 0.0
  %178 = vmatprep.subr.mxu0 0.0
  %179 = vmatpush1.msra.mxu0 0.0
  %180 = vmatprep.subr.mxu0 0.0
  %181 = vmatpush1.msra.mxu0 0.0
  %182 = vmatprep.subr.mxu0 0.0
  %183 = vmatpush1.msra.mxu0 0.0
  %184 = vmatprep.subr.mxu0 0.0
  %185 = vmatpush1.msra.mxu0 0.0
  %186 = vmatprep.subr.mxu0 0.0
  %187 = vmatpush1.msra.mxu0 0.0
  %188 = vmatprep.subr.mxu0 0.0
  %189 = vmatpush1.msra.mxu0 0.0
  %190 = vmatprep.subr.mxu0 0.0
  %191 = vmatpush1.msra.mxu0 0.0
  %192 = vmatprep.subr.mxu0 0.0
  %193 = vmatpush1.msra.mxu0 0.0
  %194 = vmatprep.subr.mxu0 0.0
  %195 = vmatpush1.msra.mxu0 0.0
  %196 = vmatprep.subr.mxu0 0.0
  %197 = vmatpush1.msra.mxu0 0.0
  %198 = vmatprep.subr.mxu0 0.0
  %199 = vmatpush1.msra.mxu0 0.0
  %200 = vmatprep.subr.mxu0 0.0
  %201 = vmatpush1.msra.mxu0 0.0
  %202 = vmatprep.subr.mxu0 0.0
  %203 = vmatpush1.msra.mxu0 0.0
  %204 = vmatprep.subr.mxu0 0.0
  %205 = vmatpush1.msra.mxu0 0.0
  %206 = vmatprep.mubr.f32.mxu0 0.0
  %207 = vmatmul.mubr.f32.gmra.mrb[0].mxu0 %v119
  %v208 = vpop.f32.mrb[0].mxu0
  %v209 = vadd.f32 %v92, %v208
  %v210 = vpop.f32.mrb[0].mxu0
  %211 = vmatprep.mubr.f32.mxu0 0.0
  %212 = vmatmul.mubr.f32.gmra.mrb[0].mxu0 %v122
  %v213 = vpop.f32.mrb[0].mxu0
  %v214 = vadd.f32 %v92, %v213
  %v215 = vpop.f32.mrb[0].mxu0
  %216 = vmatprep.mubr.f32.mxu0 0.0
  %217 = vmatmul.mubr.f32.gmra.mrb[0].mxu0 %v125
  %v218 = vpop.f32.mrb[0].mxu0
  %v219 = vadd.f32 %v92, %v218
  %v220 = vpop.f32.mrb[0].mxu0
  %221 = vmatprep.mubr.f32.mxu0 0.0
  %222 = vmatmul.mubr.f32.gmra.mrb[0].mxu0 %v128
  %v223 = vpop.f32.mrb[0].mxu0
  %v224 = vadd.f32 %v92, %v223
  %v225 = vpop.f32.mrb[0].mxu0
  %226 = vmatprep.mubr.f32.mxu0 0.0
  %227 = vmatmul.mubr.f32.gmra.mrb[0].mxu0 %v131
  %v228 = vpop.f32.mrb[0].mxu0
  %v229 = vadd.f32 %v92, %v228
  %v230 = vpop.f32.mrb[0].mxu0
  %231 = vmatprep.mubr.f32.mxu0 0.0
  %232 = vmatmul.mubr.f32.gmra.mrb[0].mxu0 %v134
  %v233 = vpop.f32.mrb[0].mxu0
  %v234 = vadd.f32 %v92, %v233
  %v235 = vpop.f32.mrb[0].mxu0
  %236 = vmatprep.mubr.f32.mxu0 0.0
  %237 = vmatmul.mubr.f32.gmra.mrb[0].mxu0 %v137
  %v238 = vpop.f32.mrb[0].mxu0
  %v239 = vadd.f32 %v92, %v238
  %v240 = vpop.f32.mrb[0].mxu0
  %241 = vmatprep.mubr.f32.mxu0 0.0
  %242 = vmatmul.mubr.f32.gmra.mrb[0].mxu0 %v140
  %v243 = vpop.f32.mrb[0].mxu0
  %v244 = vadd.f32 %v92, %v243
  %v245 = vpop.f32.mrb[0].mxu0
  %246 = vdwg.mxu0
  %v247 = vmul.f32 %v209, %v107
  %v248 = vmul.f32 %v214, %v108
  %v249 = vmul.f32 %v219, %v107
  %v250 = vmul.f32 %v224, %v108
  %v251 = vmul.f32 %v229, %v107
  %v252 = vmul.f32 %v234, %v108
  %v253 = vmul.f32 %v239, %v107
  %v254 = vmul.f32 %v244, %v108
  %vm255 = vcmask 261120
  %v256 = vsel %vm255, %v247, 0.0
  %257 = vadd.xlane.f32.xlu0 %v256
  %v258 = vpop.xlane.xlu0 %257
  %v259 = vsel %vm255, %v248, 0.0
  %260 = vadd.xlane.f32.xlu0 %v259
  %v261 = vpop.xlane.xlu0 %260
  %v262 = vsel %vm255, %v249, 0.0
  %263 = vadd.xlane.f32.xlu0 %v262
  %v264 = vpop.xlane.xlu0 %263
  %v265 = vsel %vm255, %v250, 0.0
  %266 = vadd.xlane.f32.xlu0 %v265
  %v267 = vpop.xlane.xlu0 %266
  %v268 = vsel %vm255, %v251, 0.0
  %269 = vadd.xlane.f32.xlu0 %v268
  %v270 = vpop.xlane.xlu0 %269
  %v271 = vsel %vm255, %v252, 0.0
  %272 = vadd.xlane.f32.xlu0 %v271
  %v273 = vpop.xlane.xlu0 %272
  %v274 = vsel %vm255, %v253, 0.0
  %275 = vadd.xlane.f32.xlu0 %v274
  %v276 = vpop.xlane.xlu0 %275
  %v277 = vsel %vm255, %v254, 0.0
  %278 = vadd.xlane.f32.xlu0 %v277
  %v279 = vpop.xlane.xlu0 %278
  %288 = vrot.lane.b32.xlu0 %v247, 96
  %v289 = vpop.permute.xlu0 %288
  %290 = vrot.lane.b32.xlu0 %v248, 96
  %v291 = vpop.permute.xlu0 %290
  %292 = vrot.lane.b32.xlu0 %v249, 96
  %v293 = vpop.permute.xlu0 %292
  %294 = vrot.lane.b32.xlu0 %v250, 96
  %v295 = vpop.permute.xlu0 %294
  %296 = vrot.lane.b32.xlu0 %v251, 96
  %v297 = vpop.permute.xlu0 %296
  %298 = vrot.lane.b32.xlu0 %v252, 96
  %v299 = vpop.permute.xlu0 %298
  %300 = vrot.lane.b32.xlu0 %v253, 96
  %v301 = vpop.permute.xlu0 %300
  %302 = vrot.lane.b32.xlu0 %v254, 96
  %v303 = vpop.permute.xlu0 %302
  %v312 = vsel %vm255, %v289, 0.0
  %313 = vadd.xlane.f32.xlu0 %v312
  %v314 = vpop.xlane.xlu0 %313
  %v315 = vsel %vm255, %v291, 0.0
  %316 = vadd.xlane.f32.xlu0 %v315
  %v317 = vpop.xlane.xlu0 %316
  %v318 = vsel %vm255, %v293, 0.0
  %319 = vadd.xlane.f32.xlu0 %v318
  %v320 = vpop.xlane.xlu0 %319
  %v321 = vsel %vm255, %v295, 0.0
  %322 = vadd.xlane.f32.xlu0 %v321
  %v323 = vpop.xlane.xlu0 %322
  %v324 = vsel %vm255, %v297, 0.0
  %325 = vadd.xlane.f32.xlu0 %v324
  %v326 = vpop.xlane.xlu0 %325
  %v327 = vsel %vm255, %v299, 0.0
  %328 = vadd.xlane.f32.xlu0 %v327
  %v329 = vpop.xlane.xlu0 %328
  %v330 = vsel %vm255, %v301, 0.0
  %331 = vadd.xlane.f32.xlu0 %v330
  %v332 = vpop.xlane.xlu0 %331
  %v333 = vsel %vm255, %v303, 0.0
  %334 = vadd.xlane.f32.xlu0 %v333
  %v335 = vpop.xlane.xlu0 %334
  %vm336 = vcmask 7168
  %v337 = vsel %vm336, %v258, %v314
  %v338 = vsel %vm336, %v261, %v317
  %v339 = vsel %vm336, %v264, %v320
  %v340 = vsel %vm336, %v267, %v323
  %v341 = vsel %vm336, %v270, %v326
  %v342 = vsel %vm336, %v273, %v329
  %v343 = vsel %vm336, %v276, %v332
  %v344 = vsel %vm336, %v279, %v335
  %v345 = vtanh.pop %v337
  %v346 = vtanh.pop %v338
  %v347 = vtanh.pop %v339
  %v348 = vtanh.pop %v340
  %v349 = vtanh.pop %v341
  %v350 = vtanh.pop %v342
  %v351 = vtanh.pop %v343
  %v352 = vtanh.pop %v344
  %v353 = vmul.f32 %v345, 1.442695
  %v354 = vpow.pop %v353
  %v355 = vmul.f32 %v346, 1.442695
  %v356 = vpow.pop %v355
  %v357 = vmul.f32 %v347, 1.442695
  %v358 = vpow.pop %v357
  %v359 = vmul.f32 %v348, 1.442695
  %v360 = vpow.pop %v359
  %v361 = vmul.f32 %v349, 1.442695
  %v362 = vpow.pop %v361
  %v363 = vmul.f32 %v350, 1.442695
  %v364 = vpow.pop %v363
  %v365 = vmul.f32 %v351, 1.442695
  %v366 = vpow.pop %v365
  %v367 = vmul.f32 %v352, 1.442695
  %v368 = vpow.pop %v367
  %v369 = vmul.f32 %v354, %v109
  %v370 = vmul.f32 %v356, %v110
  %v371 = vmul.f32 %v358, %v111
  %v372 = vmul.f32 %v360, %v112
  %v373 = vmul.f32 %v362, %v113
  %v374 = vmul.f32 %v364, %v114
  %v375 = vmul.f32 %v366, %v115
  %v376 = vmul.f32 %v368, %v116
  %378 = vset.pattern.permute.xlu0 0
  %379 = vperm.xlu0 %378, %v369
  %v380 = vpop.permute.xlu0 %379
  %383 = vset.pattern.permute.xlu0 0
  %384 = vperm.xlu0 %383, %v370
  %v385 = vpop.permute.xlu0 %384
  %388 = vset.pattern.permute.xlu0 0
  %389 = vperm.xlu0 %388, %v371
  %v390 = vpop.permute.xlu0 %389
  %393 = vset.pattern.permute.xlu0 0
  %394 = vperm.xlu0 %393, %v372
  %v395 = vpop.permute.xlu0 %394
  %398 = vset.pattern.permute.xlu0 0
  %399 = vperm.xlu0 %398, %v373
  %v400 = vpop.permute.xlu0 %399
  %403 = vset.pattern.permute.xlu0 0
  %404 = vperm.xlu0 %403, %v374
  %v405 = vpop.permute.xlu0 %404
  %408 = vset.pattern.permute.xlu0 0
  %409 = vperm.xlu0 %408, %v375
  %v410 = vpop.permute.xlu0 %409
  %413 = vset.pattern.permute.xlu0 0
  %414 = vperm.xlu0 %413, %v376
  %v415 = vpop.permute.xlu0 %414
  %417 = vset.pattern.permute.xlu0 1
  %418 = vperm.xlu0 %417, %v369
  %v419 = vpop.permute.xlu0 %418
  %421 = vset.pattern.permute.xlu0 1
  %422 = vperm.xlu0 %421, %v370
  %v423 = vpop.permute.xlu0 %422
  %425 = vset.pattern.permute.xlu0 1
  %426 = vperm.xlu0 %425, %v371
  %v427 = vpop.permute.xlu0 %426
  %429 = vset.pattern.permute.xlu0 1
  %430 = vperm.xlu0 %429, %v372
  %v431 = vpop.permute.xlu0 %430
  %433 = vset.pattern.permute.xlu0 1
  %434 = vperm.xlu0 %433, %v373
  %v435 = vpop.permute.xlu0 %434
  %437 = vset.pattern.permute.xlu0 1
  %438 = vperm.xlu0 %437, %v374
  %v439 = vpop.permute.xlu0 %438
  %441 = vset.pattern.permute.xlu0 1
  %442 = vperm.xlu0 %441, %v375
  %v443 = vpop.permute.xlu0 %442
  %445 = vset.pattern.permute.xlu0 1
  %446 = vperm.xlu0 %445, %v376
  %v447 = vpop.permute.xlu0 %446
  %v449 = vsel %vm255, %v380, %v419
  %v450 = vsel %vm255, %v385, %v423
  %v451 = vsel %vm255, %v390, %v427
  %v452 = vsel %vm255, %v395, %v431
  %v453 = vsel %vm255, %v400, %v435
  %v454 = vsel %vm255, %v405, %v439
  %v455 = vsel %vm255, %v410, %v443
  %v456 = vsel %vm255, %v415, %v447
  %v457 = vmul.f32 %v449, %v99
  %v458 = vmul.f32 %v450, %v100
  %v459 = vadd.f32 %v457, 0.0
  %v460 = vadd.f32 %v458, 0.0
  %v461 = vadd.f32 %v369, 0.0
  %v462 = vadd.f32 %v370, 0.0
  %v463 = vmul.f32 %v451, %v101
  %v464 = vmul.f32 %v452, %v102
  %v465 = vadd.f32 %v459, %v463
  %v466 = vadd.f32 %v460, %v464
  %v467 = vadd.f32 %v461, %v371
  %v468 = vadd.f32 %v462, %v372
  %v469 = vmul.f32 %v453, %v103
  %v470 = vmul.f32 %v454, %v104
  %v471 = vadd.f32 %v465, %v469
  %v472 = vadd.f32 %v466, %v470
  %v473 = vadd.f32 %v467, %v373
  %v474 = vadd.f32 %v468, %v374
  %v475 = vmul.f32 %v455, %v105
  %v476 = vmul.f32 %v456, %v106
  %v477 = vadd.f32 %v471, %v475
  %v478 = vadd.f32 %v472, %v476
  %v479 = vadd.f32 %v473, %v375
  %v480 = vadd.f32 %v474, %v376
  %vm481 = vcmp.le.f32.partialorder %v479, 0.0
  %vm482 = vcmp.le.f32.partialorder %v480, 0.0
  %v483 = vsel %vm481, 1.0, %v479
  %v484 = vsel %vm482, 1.0, %v480
  %486 = vset.pattern.permute.xlu0 0
  %487 = vperm.xlu0 %486, %v483
  %v488 = vpop.permute.xlu0 %487
  %491 = vset.pattern.permute.xlu0 0
  %492 = vperm.xlu0 %491, %v484
  %v493 = vpop.permute.xlu0 %492
  %495 = vset.pattern.permute.xlu0 1
  %496 = vperm.xlu0 %495, %v483
  %v497 = vpop.permute.xlu0 %496
  %499 = vset.pattern.permute.xlu0 1
  %500 = vperm.xlu0 %499, %v484
  %v501 = vpop.permute.xlu0 %500
  %v503 = vsel %vm255, %v488, %v497
  %v504 = vsel %vm255, %v493, %v501
  %v505 = vrcp.pop %v503
  %v506 = vmul.f32 %v477, %v505
  %v507 = vrcp.pop %v504
  %v508 = vmul.f32 %v478, %v507
  %v510 = vlaneseq
  %v511 = vshrl.u32 %v510, 7
  %v512 = vsub.s32 0, %v511
  %v513 = vrot.slane %v94, %v512
  %v514 = vlaneseq
  %v515 = vshrl.u32 %v514, 7
  %v516 = vsub.s32 1, %v515
  %v517 = vrot.slane %v94, %v516
  %v521 = vsel %vm117, %v506, 0
  %v524 = vsel %vm117, %v508, 0
  %526 = vmatprep.subr.mxu0 %v25
  %527 = vmatpush1.msra.mxu0 %v24
  %528 = vmatprep.subr.mxu0 %v27
  %529 = vmatpush1.msra.mxu0 %v26
  %530 = vmatprep.subr.mxu0 %v29
  %531 = vmatpush1.msra.mxu0 %v28
  %532 = vmatprep.subr.mxu0 %v31
  %533 = vmatpush1.msra.mxu0 %v30
  %534 = vmatprep.subr.mxu0 %v33
  %535 = vmatpush1.msra.mxu0 %v32
  %536 = vmatprep.subr.mxu0 %v35
  %537 = vmatpush1.msra.mxu0 %v34
  %538 = vmatprep.subr.mxu0 %v37
  %539 = vmatpush1.msra.mxu0 %v36
  %540 = vmatprep.subr.mxu0 %v39
  %541 = vmatpush1.msra.mxu0 %v38
  %542 = vmatprep.subr.mxu0 0.0
  %543 = vmatpush1.msra.mxu0 0.0
  %544 = vmatprep.subr.mxu0 0.0
  %545 = vmatpush1.msra.mxu0 0.0
  %546 = vmatprep.subr.mxu0 0.0
  %547 = vmatpush1.msra.mxu0 0.0
  %548 = vmatprep.subr.mxu0 0.0
  %549 = vmatpush1.msra.mxu0 0.0
  %550 = vmatprep.subr.mxu0 0.0
  %551 = vmatpush1.msra.mxu0 0.0
  %552 = vmatprep.subr.mxu0 0.0
  %553 = vmatpush1.msra.mxu0 0.0
  %554 = vmatprep.subr.mxu0 0.0
  %555 = vmatpush1.msra.mxu0 0.0
  %556 = vmatprep.subr.mxu0 0.0
  %557 = vmatpush1.msra.mxu0 0.0
  %558 = vmatprep.subr.mxu0 0.0
  %559 = vmatpush1.msra.mxu0 0.0
  %560 = vmatprep.subr.mxu0 0.0
  %561 = vmatpush1.msra.mxu0 0.0
  %562 = vmatprep.subr.mxu0 0.0
  %563 = vmatpush1.msra.mxu0 0.0
  %564 = vmatprep.subr.mxu0 0.0
  %565 = vmatpush1.msra.mxu0 0.0
  %566 = vmatprep.subr.mxu0 0.0
  %567 = vmatpush1.msra.mxu0 0.0
  %568 = vmatprep.subr.mxu0 0.0
  %569 = vmatpush1.msra.mxu0 0.0
  %570 = vmatprep.subr.mxu0 0.0
  %571 = vmatpush1.msra.mxu0 0.0
  %572 = vmatprep.subr.mxu0 0.0
  %573 = vmatpush1.msra.mxu0 0.0
  %574 = vmatprep.subr.mxu0 0.0
  %575 = vmatpush1.msra.mxu0 0.0
  %576 = vmatprep.subr.mxu0 0.0
  %577 = vmatpush1.msra.mxu0 0.0
  %578 = vmatprep.subr.mxu0 0.0
  %579 = vmatpush1.msra.mxu0 0.0
  %580 = vmatprep.subr.mxu0 0.0
  %581 = vmatpush1.msra.mxu0 0.0
  %582 = vmatprep.subr.mxu0 0.0
  %583 = vmatpush1.msra.mxu0 0.0
  %584 = vmatprep.subr.mxu0 0.0
  %585 = vmatpush1.msra.mxu0 0.0
  %586 = vmatprep.subr.mxu0 0.0
  %587 = vmatpush1.msra.mxu0 0.0
  %588 = vmatprep.subr.mxu0 0.0
  %589 = vmatpush1.msra.mxu0 0.0
  %590 = vmatprep.mubr.f32.mxu0 0.0
  %591 = vmatmul.mubr.f32.gmra.mrb[0].mxu0 %v521
  %v592 = vpop.f32.mrb[0].mxu0
  %v593 = vadd.f32 %v513, %v592
  %v594 = vpop.f32.mrb[0].mxu0
  %v595 = vadd.f32 %v517, %v594
  %596 = vmatprep.mubr.f32.mxu0 0.0
  %597 = vmatmul.mubr.f32.gmra.mrb[0].mxu0 %v524
  %v598 = vpop.f32.mrb[0].mxu0
  %v599 = vadd.f32 %v513, %v598
  %v600 = vpop.f32.mrb[0].mxu0
  %v601 = vadd.f32 %v517, %v600
  %602 = vdwg.mxu0
  %603 = vst [vmem:[#allocation2] sm:$0xff] %v593
  %604 = vst.msk [vmem:[#allocation2 + $0x8] sm:$0xff] %vm117, %v595
  %605 = vst [vmem:[#allocation2 + $0x10] sm:$0xff] %v599
  %606 = vst.msk [vmem:[#allocation2 + $0x18] sm:$0xff] %vm117, %v601
  %607 = vst.msk [vmem:[#allocation3] sm:$0xff] %vm117, 0.0
  %608 = vst.msk [vmem:[#allocation3 + $0x8] sm:$0xff] %vm117, 0.0
  %v609 = vld [vmem:[#allocation2] sm:$0x3]
  %v610 = vld [vmem:[#allocation2 + $0x8] sm:$0x3]
  %v612 = vlaneseq
  %v613 = vshrl.u32 %v612, 7
  %v614 = vsub.s32 0, %v613
  %v615 = vrot.slane %v96, %v614
  %v616 = vlaneseq
  %v617 = vshrl.u32 %v616, 7
  %v618 = vsub.s32 1, %v617
  %v619 = vrot.slane %v96, %v618
  %v623 = vsel %vm117, 0.0, 0
  %625 = vmatprep.subr.mxu0 %v41
  %626 = vmatpush1.msra.mxu0 %v40
  %627 = vmatprep.subr.mxu0 %v43
  %628 = vmatpush1.msra.mxu0 %v42
  %629 = vmatprep.subr.mxu0 %v45
  %630 = vmatpush1.msra.mxu0 %v44
  %631 = vmatprep.subr.mxu0 %v47
  %632 = vmatpush1.msra.mxu0 %v46
  %633 = vmatprep.subr.mxu0 %v49
  %634 = vmatpush1.msra.mxu0 %v48
  %635 = vmatprep.subr.mxu0 %v51
  %636 = vmatpush1.msra.mxu0 %v50
  %637 = vmatprep.subr.mxu0 %v53
  %638 = vmatpush1.msra.mxu0 %v52
  %639 = vmatprep.subr.mxu0 %v55
  %640 = vmatpush1.msra.mxu0 %v54
  %641 = vmatprep.subr.mxu0 0.0
  %642 = vmatpush1.msra.mxu0 0.0
  %643 = vmatprep.subr.mxu0 0.0
  %644 = vmatpush1.msra.mxu0 0.0
  %645 = vmatprep.subr.mxu0 0.0
  %646 = vmatpush1.msra.mxu0 0.0
  %647 = vmatprep.subr.mxu0 0.0
  %648 = vmatpush1.msra.mxu0 0.0
  %649 = vmatprep.subr.mxu0 0.0
  %650 = vmatpush1.msra.mxu0 0.0
  %651 = vmatprep.subr.mxu0 0.0
  %652 = vmatpush1.msra.mxu0 0.0
  %653 = vmatprep.subr.mxu0 0.0
  %654 = vmatpush1.msra.mxu0 0.0
  %655 = vmatprep.subr.mxu0 0.0
  %656 = vmatpush1.msra.mxu0 0.0
  %657 = vmatprep.subr.mxu0 0.0
  %658 = vmatpush1.msra.mxu0 0.0
  %659 = vmatprep.subr.mxu0 0.0
  %660 = vmatpush1.msra.mxu0 0.0
  %661 = vmatprep.subr.mxu0 0.0
  %662 = vmatpush1.msra.mxu0 0.0
  %663 = vmatprep.subr.mxu0 0.0
  %664 = vmatpush1.msra.mxu0 0.0
  %665 = vmatprep.subr.mxu0 0.0
  %666 = vmatpush1.msra.mxu0 0.0
  %667 = vmatprep.subr.mxu0 0.0
  %668 = vmatpush1.msra.mxu0 0.0
  %669 = vmatprep.subr.mxu0 0.0
  %670 = vmatpush1.msra.mxu0 0.0
  %671 = vmatprep.subr.mxu0 0.0
  %672 = vmatpush1.msra.mxu0 0.0
  %673 = vmatprep.subr.mxu0 0.0
  %674 = vmatpush1.msra.mxu0 0.0
  %675 = vmatprep.subr.mxu0 0.0
  %676 = vmatpush1.msra.mxu0 0.0
  %677 = vmatprep.subr.mxu0 0.0
  %678 = vmatpush1.msra.mxu0 0.0
  %679 = vmatprep.subr.mxu0 0.0
  %680 = vmatpush1.msra.mxu0 0.0
  %681 = vmatprep.subr.mxu0 0.0
  %682 = vmatpush1.msra.mxu0 0.0
  %683 = vmatprep.subr.mxu0 0.0
  %684 = vmatpush1.msra.mxu0 0.0
  %685 = vmatprep.subr.mxu0 0.0
  %686 = vmatpush1.msra.mxu0 0.0
  %687 = vmatprep.subr.mxu0 0.0
  %688 = vmatpush1.msra.mxu0 0.0
  %689 = vmatprep.mubr.f32.mxu0 0.0
  %690 = vmatmul.mubr.f32.gmra.mrb[0].mxu0 %v623
  %v691 = vpop.f32.mrb[0].mxu0
  %v692 = vadd.f32 %v615, %v691
  %v693 = vpop.f32.mrb[0].mxu0
  %v694 = vadd.f32 %v619, %v693
  %695 = vdwg.mxu0
  %v696 = vadd.f32 %v609, %v692
  %v697 = vxor.u32 %v696, 2147483648
  %v698 = vmul.f32 %v697, 1.442695
  %v699 = vpow.pop %v698
  %v700 = vadd.f32 %v699, 1.0
  %v701 = vrcp.pop %v700
  %v702 = vmul.f32 1.0, %v701
  %v703 = vmul.f32 %v702, %v694
  %v704 = vadd.f32 %v610, %v703
  %v705 = vtanh.pop %v704
  %v706 = vmul.f32 %v702, 0.0
  %v707 = vsub.f32 1.0, %v702
  %709 = vrot.lane.b32.xlu0 %v705, 64
  %v710 = vpop.permute.xlu0 %709
  %v712 = vmul.f32 %v707, %v710
  %v713 = vadd.f32 %v706, %v712
  %715 = vrot.lane.b32.xlu0 %v713, 64
  %v716 = vpop.permute.xlu0 %715
  %vm718 = vcmask 517120
  %719 = vst.msk [vmem:[#allocation3] sm:$0x3] %vm718, %v716
  %v720 = vld [vmem:[#allocation2] sm:$0xc]
  %v721 = vld [vmem:[#allocation2 + $0x8] sm:$0xc]
  %v722 = vsel %vm117, %v716, 0
  %724 = vmatprep.subr.mxu0 %v41
  %725 = vmatpush1.msra.mxu0 %v40
  %726 = vmatprep.subr.mxu0 %v43
  %727 = vmatpush1.msra.mxu0 %v42
  %728 = vmatprep.subr.mxu0 %v45
  %729 = vmatpush1.msra.mxu0 %v44
  %730 = vmatprep.subr.mxu0 %v47
  %731 = vmatpush1.msra.mxu0 %v46
  %732 = vmatprep.subr.mxu0 %v49
  %733 = vmatpush1.msra.mxu0 %v48
  %734 = vmatprep.subr.mxu0 %v51
  %735 = vmatpush1.msra.mxu0 %v50
  %736 = vmatprep.subr.mxu0 %v53
  %737 = vmatpush1.msra.mxu0 %v52
  %738 = vmatprep.subr.mxu0 %v55
  %739 = vmatpush1.msra.mxu0 %v54
  %740 = vmatprep.subr.mxu0 0.0
  %741 = vmatpush1.msra.mxu0 0.0
  %742 = vmatprep.subr.mxu0 0.0
  %743 = vmatpush1.msra.mxu0 0.0
  %744 = vmatprep.subr.mxu0 0.0
  %745 = vmatpush1.msra.mxu0 0.0
  %746 = vmatprep.subr.mxu0 0.0
  %747 = vmatpush1.msra.mxu0 0.0
  %748 = vmatprep.subr.mxu0 0.0
  %749 = vmatpush1.msra.mxu0 0.0
  %750 = vmatprep.subr.mxu0 0.0
  %751 = vmatpush1.msra.mxu0 0.0
  %752 = vmatprep.subr.mxu0 0.0
  %753 = vmatpush1.msra.mxu0 0.0
  %754 = vmatprep.subr.mxu0 0.0
  %755 = vmatpush1.msra.mxu0 0.0
  %756 = vmatprep.subr.mxu0 0.0
  %757 = vmatpush1.msra.mxu0 0.0
  %758 = vmatprep.subr.mxu0 0.0
  %759 = vmatpush1.msra.mxu0 0.0
  %760 = vmatprep.subr.mxu0 0.0
  %761 = vmatpush1.msra.mxu0 0.0
  %762 = vmatprep.subr.mxu0 0.0
  %763 = vmatpush1.msra.mxu0 0.0
  %764 = vmatprep.subr.mxu0 0.0
  %765 = vmatpush1.msra.mxu0 0.0
  %766 = vmatprep.subr.mxu0 0.0
  %767 = vmatpush1.msra.mxu0 0.0
  %768 = vmatprep.subr.mxu0 0.0
  %769 = vmatpush1.msra.mxu0 0.0
  %770 = vmatprep.subr.mxu0 0.0
  %771 = vmatpush1.msra.mxu0 0.0
  %772 = vmatprep.subr.mxu0 0.0
  %773 = vmatpush1.msra.mxu0 0.0
  %774 = vmatprep.subr.mxu0 0.0
  %775 = vmatpush1.msra.mxu0 0.0
  %776 = vmatprep.subr.mxu0 0.0
  %777 = vmatpush1.msra.mxu0 0.0
  %778 = vmatprep.subr.mxu0 0.0
  %779 = vmatpush1.msra.mxu0 0.0
  %780 = vmatprep.subr.mxu0 0.0
  %781 = vmatpush1.msra.mxu0 0.0
  %782 = vmatprep.subr.mxu0 0.0
  %783 = vmatpush1.msra.mxu0 0.0
  %784 = vmatprep.subr.mxu0 0.0
  %785 = vmatpush1.msra.mxu0 0.0
  %786 = vmatprep.subr.mxu0 0.0
  %787 = vmatpush1.msra.mxu0 0.0
  %788 = vmatprep.mubr.f32.mxu0 0.0
  %789 = vmatmul.mubr.f32.gmra.mrb[0].mxu0 %v722
  %v790 = vpop.f32.mrb[0].mxu0
  %v791 = vadd.f32 %v615, %v790
  %v792 = vpop.f32.mrb[0].mxu0
  %v793 = vadd.f32 %v619, %v792
  %794 = vdwg.mxu0
  %v796 = vrot.slane %v791, 6
  %v798 = vadd.f32 %v720, %v796
  %v799 = vxor.u32 %v798, 2147483648
  %v800 = vmul.f32 %v799, 1.442695
  %v801 = vpow.pop %v800
  %v802 = vadd.f32 %v801, 1.0
  %v803 = vrcp.pop %v802
  %v804 = vmul.f32 1.0, %v803
  %v806 = vrot.slane %v793, 6
  %v808 = vmul.f32 %v804, %v806
  %v809 = vadd.f32 %v721, %v808
  %v810 = vtanh.pop %v809
  %v811 = vrot.slane %v713, 6
  %v813 = vmul.f32 %v804, %v811
  %v814 = vsub.f32 1.0, %v804
  %816 = vrot.lane.b32.xlu0 %v810, 64
  %v817 = vpop.permute.xlu0 %816
  %v819 = vmul.f32 %v814, %v817
  %v820 = vadd.f32 %v813, %v819
  %822 = vrot.lane.b32.xlu0 %v820, 64
  %v823 = vpop.permute.xlu0 %822
  %vm825 = vcmask 519170
  %826 = vst.msk [vmem:[#allocation3] sm:$0xc] %vm825, %v823
  %v827 = vld [vmem:[#allocation2] sm:$0x30]
  %v828 = vld [vmem:[#allocation2 + $0x8] sm:$0x30]
  %v829 = vrot.slane %v820, 2
  %830 = vrot.lane.b32.xlu0 %v829, 64
  %v831 = vpop.permute.xlu0 %830
  %v832 = vsel %vm117, %v831, 0
  %834 = vmatprep.subr.mxu0 %v41
  %835 = vmatpush1.msra.mxu0 %v40
  %836 = vmatprep.subr.mxu0 %v43
  %837 = vmatpush1.msra.mxu0 %v42
  %838 = vmatprep.subr.mxu0 %v45
  %839 = vmatpush1.msra.mxu0 %v44
  %840 = vmatprep.subr.mxu0 %v47
  %841 = vmatpush1.msra.mxu0 %v46
  %842 = vmatprep.subr.mxu0 %v49
  %843 = vmatpush1.msra.mxu0 %v48
  %844 = vmatprep.subr.mxu0 %v51
  %845 = vmatpush1.msra.mxu0 %v50
  %846 = vmatprep.subr.mxu0 %v53
  %847 = vmatpush1.msra.mxu0 %v52
  %848 = vmatprep.subr.mxu0 %v55
  %849 = vmatpush1.msra.mxu0 %v54
  %850 = vmatprep.subr.mxu0 0.0
  %851 = vmatpush1.msra.mxu0 0.0
  %852 = vmatprep.subr.mxu0 0.0
  %853 = vmatpush1.msra.mxu0 0.0
  %854 = vmatprep.subr.mxu0 0.0
  %855 = vmatpush1.msra.mxu0 0.0
  %856 = vmatprep.subr.mxu0 0.0
  %857 = vmatpush1.msra.mxu0 0.0
  %858 = vmatprep.subr.mxu0 0.0
  %859 = vmatpush1.msra.mxu0 0.0
  %860 = vmatprep.subr.mxu0 0.0
  %861 = vmatpush1.msra.mxu0 0.0
  %862 = vmatprep.subr.mxu0 0.0
  %863 = vmatpush1.msra.mxu0 0.0
  %864 = vmatprep.subr.mxu0 0.0
  %865 = vmatpush1.msra.mxu0 0.0
  %866 = vmatprep.subr.mxu0 0.0
  %867 = vmatpush1.msra.mxu0 0.0
  %868 = vmatprep.subr.mxu0 0.0
  %869 = vmatpush1.msra.mxu0 0.0
  %870 = vmatprep.subr.mxu0 0.0
  %871 = vmatpush1.msra.mxu0 0.0
  %872 = vmatprep.subr.mxu0 0.0
  %873 = vmatpush1.msra.mxu0 0.0
  %874 = vmatprep.subr.mxu0 0.0
  %875 = vmatpush1.msra.mxu0 0.0
  %876 = vmatprep.subr.mxu0 0.0
  %877 = vmatpush1.msra.mxu0 0.0
  %878 = vmatprep.subr.mxu0 0.0
  %879 = vmatpush1.msra.mxu0 0.0
  %880 = vmatprep.subr.mxu0 0.0
  %881 = vmatpush1.msra.mxu0 0.0
  %882 = vmatprep.subr.mxu0 0.0
  %883 = vmatpush1.msra.mxu0 0.0
  %884 = vmatprep.subr.mxu0 0.0
  %885 = vmatpush1.msra.mxu0 0.0
  %886 = vmatprep.subr.mxu0 0.0
  %887 = vmatpush1.msra.mxu0 0.0
  %888 = vmatprep.subr.mxu0 0.0
  %889 = vmatpush1.msra.mxu0 0.0
  %890 = vmatprep.subr.mxu0 0.0
  %891 = vmatpush1.msra.mxu0 0.0
  %892 = vmatprep.subr.mxu0 0.0
  %893 = vmatpush1.msra.mxu0 0.0
  %894 = vmatprep.subr.mxu0 0.0
  %895 = vmatpush1.msra.mxu0 0.0
  %896 = vmatprep.subr.mxu0 0.0
  %897 = vmatpush1.msra.mxu0 0.0
  %898 = vmatprep.mubr.f32.mxu0 0.0
  %899 = vmatmul.mubr.f32.gmra.mrb[0].mxu0 %v832
  %v900 = vpop.f32.mrb[0].mxu0
  %v901 = vadd.f32 %v615, %v900
  %v902 = vpop.f32.mrb[0].mxu0
  %v903 = vadd.f32 %v619, %v902
  %904 = vdwg.mxu0
  %v906 = vrot.slane %v901, 4
  %v908 = vadd.f32 %v827, %v906
  %v909 = vxor.u32 %v908, 2147483648
  %v910 = vmul.f32 %v909, 1.442695
  %v911 = vpow.pop %v910
  %v912 = vadd.f32 %v911, 1.0
  %v913 = vrcp.pop %v912
  %v914 = vmul.f32 1.0, %v913
  %v916 = vrot.slane %v903, 4
  %v918 = vmul.f32 %v914, %v916
  %v919 = vadd.f32 %v828, %v918
  %v920 = vtanh.pop %v919
  %v921 = vrot.slane %v820, 6
  %v923 = vmul.f32 %v914, %v921
  %v924 = vsub.f32 1.0, %v914
  %926 = vrot.lane.b32.xlu0 %v920, 64
  %v927 = vpop.permute.xlu0 %926
  %v929 = vmul.f32 %v924, %v927
  %v930 = vadd.f32 %v923, %v929
  %932 = vrot.lane.b32.xlu0 %v930, 64
  %v933 = vpop.permute.xlu0 %932
  %vm935 = vcmask 521220
  %936 = vst.msk [vmem:[#allocation3] sm:$0x30] %vm935, %v933
  %v937 = vld [vmem:[#allocation2] sm:$0xc0]
  %v938 = vld [vmem:[#allocation2 + $0x8] sm:$0xc0]
  %v939 = vrot.slane %v930, 4
  %940 = vrot.lane.b32.xlu0 %v939, 64
  %v941 = vpop.permute.xlu0 %940
  %v942 = vsel %vm117, %v941, 0
  %944 = vmatprep.subr.mxu0 %v41
  %945 = vmatpush1.msra.mxu0 %v40
  %946 = vmatprep.subr.mxu0 %v43
  %947 = vmatpush1.msra.mxu0 %v42
  %948 = vmatprep.subr.mxu0 %v45
  %949 = vmatpush1.msra.mxu0 %v44
  %950 = vmatprep.subr.mxu0 %v47
  %951 = vmatpush1.msra.mxu0 %v46
  %952 = vmatprep.subr.mxu0 %v49
  %953 = vmatpush1.msra.mxu0 %v48
  %954 = vmatprep.subr.mxu0 %v51
  %955 = vmatpush1.msra.mxu0 %v50
  %956 = vmatprep.subr.mxu0 %v53
  %957 = vmatpush1.msra.mxu0 %v52
  %958 = vmatprep.subr.mxu0 %v55
  %959 = vmatpush1.msra.mxu0 %v54
  %960 = vmatprep.subr.mxu0 0.0
  %961 = vmatpush1.msra.mxu0 0.0
  %962 = vmatprep.subr.mxu0 0.0
  %963 = vmatpush1.msra.mxu0 0.0
  %964 = vmatprep.subr.mxu0 0.0
  %965 = vmatpush1.msra.mxu0 0.0
  %966 = vmatprep.subr.mxu0 0.0
  %967 = vmatpush1.msra.mxu0 0.0
  %968 = vmatprep.subr.mxu0 0.0
  %969 = vmatpush1.msra.mxu0 0.0
  %970 = vmatprep.subr.mxu0 0.0
  %971 = vmatpush1.msra.mxu0 0.0
  %972 = vmatprep.subr.mxu0 0.0
  %973 = vmatpush1.msra.mxu0 0.0
  %974 = vmatprep.subr.mxu0 0.0
  %975 = vmatpush1.msra.mxu0 0.0
  %976 = vmatprep.subr.mxu0 0.0
  %977 = vmatpush1.msra.mxu0 0.0
  %978 = vmatprep.subr.mxu0 0.0
  %979 = vmatpush1.msra.mxu0 0.0
  %980 = vmatprep.subr.mxu0 0.0
  %981 = vmatpush1.msra.mxu0 0.0
  %982 = vmatprep.subr.mxu0 0.0
  %983 = vmatpush1.msra.mxu0 0.0
  %984 = vmatprep.subr.mxu0 0.0
  %985 = vmatpush1.msra.mxu0 0.0
  %986 = vmatprep.subr.mxu0 0.0
  %987 = vmatpush1.msra.mxu0 0.0
  %988 = vmatprep.subr.mxu0 0.0
  %989 = vmatpush1.msra.mxu0 0.0
  %990 = vmatprep.subr.mxu0 0.0
  %991 = vmatpush1.msra.mxu0 0.0
  %992 = vmatprep.subr.mxu0 0.0
  %993 = vmatpush1.msra.mxu0 0.0
  %994 = vmatprep.subr.mxu0 0.0
  %995 = vmatpush1.msra.mxu0 0.0
  %996 = vmatprep.subr.mxu0 0.0
  %997 = vmatpush1.msra.mxu0 0.0
  %998 = vmatprep.subr.mxu0 0.0
  %999 = vmatpush1.msra.mxu0 0.0
  %1000 = vmatprep.subr.mxu0 0.0
  %1001 = vmatpush1.msra.mxu0 0.0
  %1002 = vmatprep.subr.mxu0 0.0
  %1003 = vmatpush1.msra.mxu0 0.0
  %1004 = vmatprep.subr.mxu0 0.0
  %1005 = vmatpush1.msra.mxu0 0.0
  %1006 = vmatprep.subr.mxu0 0.0
  %1007 = vmatpush1.msra.mxu0 0.0
  %1008 = vmatprep.mubr.f32.mxu0 0.0
  %1009 = vmatmul.mubr.f32.gmra.mrb[0].mxu0 %v942
  %v1010 = vpop.f32.mrb[0].mxu0
  %v1011 = vadd.f32 %v615, %v1010
  %v1012 = vpop.f32.mrb[0].mxu0
  %v1013 = vadd.f32 %v619, %v1012
  %1014 = vdwg.mxu0
  %v1016 = vrot.slane %v1011, 2
  %v1018 = vadd.f32 %v937, %v1016
  %v1019 = vxor.u32 %v1018, 2147483648
  %v1020 = vmul.f32 %v1019, 1.442695
  %v1021 = vpow.pop %v1020
  %v1022 = vadd.f32 %v1021, 1.0
  %v1023 = vrcp.pop %v1022
  %v1024 = vmul.f32 1.0, %v1023
  %v1026 = vrot.slane %v1013, 2
  %v1028 = vmul.f32 %v1024, %v1026
  %v1029 = vadd.f32 %v938, %v1028
  %v1030 = vtanh.pop %v1029
  %v1031 = vrot.slane %v930, 6
  %v1033 = vmul.f32 %v1024, %v1031
  %v1034 = vsub.f32 1.0, %v1024
  %1036 = vrot.lane.b32.xlu0 %v1030, 64
  %v1037 = vpop.permute.xlu0 %1036
  %v1039 = vmul.f32 %v1034, %v1037
  %v1040 = vadd.f32 %v1033, %v1039
  %1042 = vrot.lane.b32.xlu0 %v1040, 64
  %v1043 = vpop.permute.xlu0 %1042
  %vm1045 = vcmask 523270
  %1046 = vst.msk [vmem:[#allocation3] sm:$0xc0] %vm1045, %v1043
  %v1047 = vld [vmem:[#allocation2 + $0x10] sm:$0x3]
  %v1048 = vld [vmem:[#allocation2 + $0x18] sm:$0x3]
  %v1049 = vrot.slane %v1040, 6
  %1050 = vrot.lane.b32.xlu0 %v1049, 64
  %v1051 = vpop.permute.xlu0 %1050
  %v1052 = vsel %vm117, %v1051, 0
  %1054 = vmatprep.subr.mxu0 %v41
  %1055 = vmatpush1.msra.mxu0 %v40
  %1056 = vmatprep.subr.mxu0 %v43
  %1057 = vmatpush1.msra.mxu0 %v42
  %1058 = vmatprep.subr.mxu0 %v45
  %1059 = vmatpush1.msra.mxu0 %v44
  %1060 = vmatprep.subr.mxu0 %v47
  %1061 = vmatpush1.msra.mxu0 %v46
  %1062 = vmatprep.subr.mxu0 %v49
  %1063 = vmatpush1.msra.mxu0 %v48
  %1064 = vmatprep.subr.mxu0 %v51
  %1065 = vmatpush1.msra.mxu0 %v50
  %1066 = vmatprep.subr.mxu0 %v53
  %1067 = vmatpush1.msra.mxu0 %v52
  %1068 = vmatprep.subr.mxu0 %v55
  %1069 = vmatpush1.msra.mxu0 %v54
  %1070 = vmatprep.subr.mxu0 0.0
  %1071 = vmatpush1.msra.mxu0 0.0
  %1072 = vmatprep.subr.mxu0 0.0
  %1073 = vmatpush1.msra.mxu0 0.0
  %1074 = vmatprep.subr.mxu0 0.0
  %1075 = vmatpush1.msra.mxu0 0.0
  %1076 = vmatprep.subr.mxu0 0.0
  %1077 = vmatpush1.msra.mxu0 0.0
  %1078 = vmatprep.subr.mxu0 0.0
  %1079 = vmatpush1.msra.mxu0 0.0
  %1080 = vmatprep.subr.mxu0 0.0
  %1081 = vmatpush1.msra.mxu0 0.0
  %1082 = vmatprep.subr.mxu0 0.0
  %1083 = vmatpush1.msra.mxu0 0.0
  %1084 = vmatprep.subr.mxu0 0.0
  %1085 = vmatpush1.msra.mxu0 0.0
  %1086 = vmatprep.subr.mxu0 0.0
  %1087 = vmatpush1.msra.mxu0 0.0
  %1088 = vmatprep.subr.mxu0 0.0
  %1089 = vmatpush1.msra.mxu0 0.0
  %1090 = vmatprep.subr.mxu0 0.0
  %1091 = vmatpush1.msra.mxu0 0.0
  %1092 = vmatprep.subr.mxu0 0.0
  %1093 = vmatpush1.msra.mxu0 0.0
  %1094 = vmatprep.subr.mxu0 0.0
  %1095 = vmatpush1.msra.mxu0 0.0
  %1096 = vmatprep.subr.mxu0 0.0
  %1097 = vmatpush1.msra.mxu0 0.0
  %1098 = vmatprep.subr.mxu0 0.0
  %1099 = vmatpush1.msra.mxu0 0.0
  %1100 = vmatprep.subr.mxu0 0.0
  %1101 = vmatpush1.msra.mxu0 0.0
  %1102 = vmatprep.subr.mxu0 0.0
  %1103 = vmatpush1.msra.mxu0 0.0
  %1104 = vmatprep.subr.mxu0 0.0
  %1105 = vmatpush1.msra.mxu0 0.0
  %1106 = vmatprep.subr.mxu0 0.0
  %1107 = vmatpush1.msra.mxu0 0.0
  %1108 = vmatprep.subr.mxu0 0.0
  %1109 = vmatpush1.msra.mxu0 0.0
  %1110 = vmatprep.subr.mxu0 0.0
  %1111 = vmatpush1.msra.mxu0 0.0
  %1112 = vmatprep.subr.mxu0 0.0
  %1113 = vmatpush1.msra.mxu0 0.0
  %1114 = vmatprep.subr.mxu0 0.0
  %1115 = vmatpush1.msra.mxu0 0.0
  %1116 = vmatprep.subr.mxu0 0.0
  %1117 = vmatpush1.msra.mxu0 0.0
  %1118 = vmatprep.mubr.f32.mxu0 0.0
  %1119 = vmatmul.mubr.f32.gmra.mrb[0].mxu0 %v1052
  %v1120 = vpop.f32.mrb[0].mxu0
  %v1121 = vadd.f32 %v615, %v1120
  %v1122 = vpop.f32.mrb[0].mxu0
  %v1123 = vadd.f32 %v619, %v1122
  %1124 = vdwg.mxu0
  %v1125 = vadd.f32 %v1047, %v1121
  %v1126 = vxor.u32 %v1125, 2147483648
  %v1127 = vmul.f32 %v1126, 1.442695
  %v1128 = vpow.pop %v1127
  %v1129 = vadd.f32 %v1128, 1.0
  %v1130 = vrcp.pop %v1129
  %v1131 = vmul.f32 1.0, %v1130
  %v1132 = vmul.f32 %v1131, %v1123
  %v1133 = vadd.f32 %v1048, %v1132
  %v1134 = vtanh.pop %v1133
  %v1136 = vmul.f32 %v1131, %v1049
  %v1137 = vsub.f32 1.0, %v1131
  %1139 = vrot.lane.b32.xlu0 %v1134, 64
  %v1140 = vpop.permute.xlu0 %1139
  %v1142 = vmul.f32 %v1137, %v1140
  %v1143 = vadd.f32 %v1136, %v1142
  %1145 = vrot.lane.b32.xlu0 %v1143, 64
  %v1146 = vpop.permute.xlu0 %1145
  %1148 = vst.msk [vmem:[#allocation3 + $0x8] sm:$0x3] %vm718, %v1146
  %v1149 = vld [vmem:[#allocation2 + $0x10] sm:$0xc]
  %v1150 = vld [vmem:[#allocation2 + $0x18] sm:$0xc]
  %v1151 = vsel %vm117, %v1146, 0
  %1153 = vmatprep.subr.mxu0 %v41
  %1154 = vmatpush1.msra.mxu0 %v40
  %1155 = vmatprep.subr.mxu0 %v43
  %1156 = vmatpush1.msra.mxu0 %v42
  %1157 = vmatprep.subr.mxu0 %v45
  %1158 = vmatpush1.msra.mxu0 %v44
  %1159 = vmatprep.subr.mxu0 %v47
  %1160 = vmatpush1.msra.mxu0 %v46
  %1161 = vmatprep.subr.mxu0 %v49
  %1162 = vmatpush1.msra.mxu0 %v48
  %1163 = vmatprep.subr.mxu0 %v51
  %1164 = vmatpush1.msra.mxu0 %v50
  %1165 = vmatprep.subr.mxu0 %v53
  %1166 = vmatpush1.msra.mxu0 %v52
  %1167 = vmatprep.subr.mxu0 %v55
  %1168 = vmatpush1.msra.mxu0 %v54
  %1169 = vmatprep.subr.mxu0 0.0
  %1170 = vmatpush1.msra.mxu0 0.0
  %1171 = vmatprep.subr.mxu0 0.0
  %1172 = vmatpush1.msra.mxu0 0.0
  %1173 = vmatprep.subr.mxu0 0.0
  %1174 = vmatpush1.msra.mxu0 0.0
  %1175 = vmatprep.subr.mxu0 0.0
  %1176 = vmatpush1.msra.mxu0 0.0
  %1177 = vmatprep.subr.mxu0 0.0
  %1178 = vmatpush1.msra.mxu0 0.0
  %1179 = vmatprep.subr.mxu0 0.0
  %1180 = vmatpush1.msra.mxu0 0.0
  %1181 = vmatprep.subr.mxu0 0.0
  %1182 = vmatpush1.msra.mxu0 0.0
  %1183 = vmatprep.subr.mxu0 0.0
  %1184 = vmatpush1.msra.mxu0 0.0
  %1185 = vmatprep.subr.mxu0 0.0
  %1186 = vmatpush1.msra.mxu0 0.0
  %1187 = vmatprep.subr.mxu0 0.0
  %1188 = vmatpush1.msra.mxu0 0.0
  %1189 = vmatprep.subr.mxu0 0.0
  %1190 = vmatpush1.msra.mxu0 0.0
  %1191 = vmatprep.subr.mxu0 0.0
  %1192 = vmatpush1.msra.mxu0 0.0
  %1193 = vmatprep.subr.mxu0 0.0
  %1194 = vmatpush1.msra.mxu0 0.0
  %1195 = vmatprep.subr.mxu0 0.0
  %1196 = vmatpush1.msra.mxu0 0.0
  %1197 = vmatprep.subr.mxu0 0.0
  %1198 = vmatpush1.msra.mxu0 0.0
  %1199 = vmatprep.subr.mxu0 0.0
  %1200 = vmatpush1.msra.mxu0 0.0
  %1201 = vmatprep.subr.mxu0 0.0
  %1202 = vmatpush1.msra.mxu0 0.0
  %1203 = vmatprep.subr.mxu0 0.0
  %1204 = vmatpush1.msra.mxu0 0.0
  %1205 = vmatprep.subr.mxu0 0.0
  %1206 = vmatpush1.msra.mxu0 0.0
  %1207 = vmatprep.subr.mxu0 0.0
  %1208 = vmatpush1.msra.mxu0 0.0
  %1209 = vmatprep.subr.mxu0 0.0
  %1210 = vmatpush1.msra.mxu0 0.0
  %1211 = vmatprep.subr.mxu0 0.0
  %1212 = vmatpush1.msra.mxu0 0.0
  %1213 = vmatprep.subr.mxu0 0.0
  %1214 = vmatpush1.msra.mxu0 0.0
  %1215 = vmatprep.subr.mxu0 0.0
  %1216 = vmatpush1.msra.mxu0 0.0
  %1217 = vmatprep.mubr.f32.mxu0 0.0
  %1218 = vmatmul.mubr.f32.gmra.mrb[0].mxu0 %v1151
  %v1219 = vpop.f32.mrb[0].mxu0
  %v1220 = vadd.f32 %v615, %v1219
  %v1221 = vpop.f32.mrb[0].mxu0
  %v1222 = vadd.f32 %v619, %v1221
  %1223 = vdwg.mxu0
  %v1225 = vrot.slane %v1220, 6
  %v1227 = vadd.f32 %v1149, %v1225
  %v1228 = vxor.u32 %v1227, 2147483648
  %v1229 = vmul.f32 %v1228, 1.442695
  %v1230 = vpow.pop %v1229
  %v1231 = vadd.f32 %v1230, 1.0
  %v1232 = vrcp.pop %v1231
  %v1233 = vmul.f32 1.0, %v1232
  %v1235 = vrot.slane %v1222, 6
  %v1237 = vmul.f32 %v1233, %v1235
  %v1238 = vadd.f32 %v1150, %v1237
  %v1239 = vtanh.pop %v1238
  %v1240 = vrot.slane %v1143, 6
  %v1242 = vmul.f32 %v1233, %v1240
  %v1243 = vsub.f32 1.0, %v1233
  %1245 = vrot.lane.b32.xlu0 %v1239, 64
  %v1246 = vpop.permute.xlu0 %1245
  %v1248 = vmul.f32 %v1243, %v1246
  %v1249 = vadd.f32 %v1242, %v1248
  %1251 = vrot.lane.b32.xlu0 %v1249, 64
  %v1252 = vpop.permute.xlu0 %1251
  %1254 = vst.msk [vmem:[#allocation3 + $0x8] sm:$0xc] %vm825, %v1252
  %v1255 = vld [vmem:[#allocation3] sm:$0xff]
  %v1256 = vld [vmem:[#allocation3 + $0x8] sm:$0xff]
  %1257 = vrot.lane.b32.xlu0 %v506, 64
  %v1258 = vpop.permute.xlu0 %1257
  %1259 = vrot.lane.b32.xlu0 %v508, 64
  %v1260 = vpop.permute.xlu0 %1259
  %v1263 = vsel %vm117, %v107, %v1258
  %v1264 = vsel %vm117, %v108, %v1260
  %v1266 = vsel %vm117, %v1255, 0
  %v1269 = vsel %vm117, %v1256, 0
  %1271 = vmatprep.subr.mxu0 0.0
  %1272 = vmatpush1.msra.mxu0 %v56
  %1273 = vmatprep.subr.mxu0 0.0
  %1274 = vmatpush1.msra.mxu0 %v57
  %1275 = vmatprep.subr.mxu0 0.0
  %1276 = vmatpush1.msra.mxu0 %v58
  %1277 = vmatprep.subr.mxu0 0.0
  %1278 = vmatpush1.msra.mxu0 %v59
  %1279 = vmatprep.subr.mxu0 0.0
  %1280 = vmatpush1.msra.mxu0 %v60
  %1281 = vmatprep.subr.mxu0 0.0
  %1282 = vmatpush1.msra.mxu0 %v61
  %1283 = vmatprep.subr.mxu0 0.0
  %1284 = vmatpush1.msra.mxu0 %v62
  %1285 = vmatprep.subr.mxu0 0.0
  %1286 = vmatpush1.msra.mxu0 %v63
  %1287 = vmatprep.subr.mxu0 0.0
  %1288 = vmatpush1.msra.mxu0 %v64
  %1289 = vmatprep.subr.mxu0 0.0
  %1290 = vmatpush1.msra.mxu0 %v65
  %1291 = vmatprep.subr.mxu0 0.0
  %1292 = vmatpush1.msra.mxu0 %v66
  %1293 = vmatprep.subr.mxu0 0.0
  %1294 = vmatpush1.msra.mxu0 %v67
  %1295 = vmatprep.subr.mxu0 0.0
  %1296 = vmatpush1.msra.mxu0 %v68
  %1297 = vmatprep.subr.mxu0 0.0
  %1298 = vmatpush1.msra.mxu0 %v69
  %1299 = vmatprep.subr.mxu0 0.0
  %1300 = vmatpush1.msra.mxu0 %v70
  %1301 = vmatprep.subr.mxu0 0.0
  %1302 = vmatpush1.msra.mxu0 %v71
  %1303 = vmatprep.subr.mxu0 0.0
  %1304 = vmatpush1.msra.mxu0 %v72
  %1305 = vmatprep.subr.mxu0 0.0
  %1306 = vmatpush1.msra.mxu0 %v73
  %1307 = vmatprep.subr.mxu0 0.0
  %1308 = vmatpush1.msra.mxu0 %v74
  %1309 = vmatprep.subr.mxu0 0.0
  %1310 = vmatpush1.msra.mxu0 %v75
  %1311 = vmatprep.subr.mxu0 0.0
  %1312 = vmatpush1.msra.mxu0 %v76
  %1313 = vmatprep.subr.mxu0 0.0
  %1314 = vmatpush1.msra.mxu0 %v77
  %1315 = vmatprep.subr.mxu0 0.0
  %1316 = vmatpush1.msra.mxu0 %v78
  %1317 = vmatprep.subr.mxu0 0.0
  %1318 = vmatpush1.msra.mxu0 %v79
  %1319 = vmatprep.subr.mxu0 0.0
  %1320 = vmatpush1.msra.mxu0 0.0
  %1321 = vmatprep.subr.mxu0 0.0
  %1322 = vmatpush1.msra.mxu0 0.0
  %1323 = vmatprep.subr.mxu0 0.0
  %1324 = vmatpush1.msra.mxu0 0.0
  %1325 = vmatprep.subr.mxu0 0.0
  %1326 = vmatpush1.msra.mxu0 0.0
  %1327 = vmatprep.subr.mxu0 0.0
  %1328 = vmatpush1.msra.mxu0 0.0
  %1329 = vmatprep.subr.mxu0 0.0
  %1330 = vmatpush1.msra.mxu0 0.0
  %1331 = vmatprep.subr.mxu0 0.0
  %1332 = vmatpush1.msra.mxu0 0.0
  %1333 = vmatprep.subr.mxu0 0.0
  %1334 = vmatpush1.msra.mxu0 0.0
  %1335 = vmatprep.mubr.f32.mxu0 %v1266
  %1336 = vmatmul.mubr.f32.gmra.mrb[0].mxu0 %v1263
  %v1337 = vpop.f32.mrb[0].mxu0
  %v1338 = vadd.f32 %v97, %v1337
  %v1339 = vpop.f32.mrb[0].mxu0
  %1340 = vmatprep.mubr.f32.mxu0 %v1269
  %1341 = vmatmul.mubr.f32.gmra.mrb[0].mxu0 %v1264
  %v1342 = vpop.f32.mrb[0].mxu0
  %v1343 = vadd.f32 %v97, %v1342
  %v1344 = vpop.f32.mrb[0].mxu0
  %1345 = vdwg.mxu0
  %vm1346 = vcmask 785408
  %v1348 = vsel %vm1346, %v1338, 0
  %v1351 = vsel %vm1346, %v1343, 0
  %1353 = vmatprep.subr.mxu0 0.0
  %1354 = vmatpush1.msra.mxu0 %v80
  %1355 = vmatprep.subr.mxu0 0.0
  %1356 = vmatpush1.msra.mxu0 %v81
  %1357 = vmatprep.subr.mxu0 0.0
  %1358 = vmatpush1.msra.mxu0 %v82
  %1359 = vmatprep.subr.mxu0 0.0
  %1360 = vmatpush1.msra.mxu0 %v83
  %1361 = vmatprep.subr.mxu0 0.0
  %1362 = vmatpush1.msra.mxu0 %v84
  %1363 = vmatprep.subr.mxu0 0.0
  %1364 = vmatpush1.msra.mxu0 %v85
  %1365 = vmatprep.subr.mxu0 0.0
  %1366 = vmatpush1.msra.mxu0 %v86
  %1367 = vmatprep.subr.mxu0 0.0
  %1368 = vmatpush1.msra.mxu0 %v87
  %1369 = vmatprep.subr.mxu0 0.0
  %1370 = vmatpush1.msra.mxu0 %v88
  %1371 = vmatprep.subr.mxu0 0.0
  %1372 = vmatpush1.msra.mxu0 %v89
  %1373 = vmatprep.subr.mxu0 0.0
  %1374 = vmatpush1.msra.mxu0 %v90
  %1375 = vmatprep.subr.mxu0 0.0
  %1376 = vmatpush1.msra.mxu0 %v91
  %1377 = vmatprep.subr.mxu0 0.0
  %1378 = vmatpush1.msra.mxu0 0.0
  %1379 = vmatprep.subr.mxu0 0.0
  %1380 = vmatpush1.msra.mxu0 0.0
  %1381 = vmatprep.subr.mxu0 0.0
  %1382 = vmatpush1.msra.mxu0 0.0
  %1383 = vmatprep.subr.mxu0 0.0
  %1384 = vmatpush1.msra.mxu0 0.0
  %1385 = vmatprep.subr.mxu0 0.0
  %1386 = vmatpush1.msra.mxu0 0.0
  %1387 = vmatprep.subr.mxu0 0.0
  %1388 = vmatpush1.msra.mxu0 0.0
  %1389 = vmatprep.subr.mxu0 0.0
  %1390 = vmatpush1.msra.mxu0 0.0
  %1391 = vmatprep.subr.mxu0 0.0
  %1392 = vmatpush1.msra.mxu0 0.0
  %1393 = vmatprep.subr.mxu0 0.0
  %1394 = vmatpush1.msra.mxu0 0.0
  %1395 = vmatprep.subr.mxu0 0.0
  %1396 = vmatpush1.msra.mxu0 0.0
  %1397 = vmatprep.subr.mxu0 0.0
  %1398 = vmatpush1.msra.mxu0 0.0
  %1399 = vmatprep.subr.mxu0 0.0
  %1400 = vmatpush1.msra.mxu0 0.0
  %1401 = vmatprep.subr.mxu0 0.0
  %1402 = vmatpush1.msra.mxu0 0.0
  %1403 = vmatprep.subr.mxu0 0.0
  %1404 = vmatpush1.msra.mxu0 0.0
  %1405 = vmatprep.subr.mxu0 0.0
  %1406 = vmatpush1.msra.mxu0 0.0
  %1407 = vmatprep.subr.mxu0 0.0
  %1408 = vmatpush1.msra.mxu0 0.0
  %1409 = vmatprep.subr.mxu0 0.0
  %1410 = vmatpush1.msra.mxu0 0.0
  %1411 = vmatprep.subr.mxu0 0.0
  %1412 = vmatpush1.msra.mxu0 0.0
  %1413 = vmatprep.subr.mxu0 0.0
  %1414 = vmatpush1.msra.mxu0 0.0
  %1415 = vmatprep.subr.mxu0 0.0
  %1416 = vmatpush1.msra.mxu0 0.0
  %1417 = vmatprep.mubr.f32.mxu0 0.0
  %1418 = vmatmul.mubr.f32.gmra.mrb[0].mxu0 %v1348
  %v1419 = vpop.f32.mrb[0].mxu0
  %v1420 = vadd.f32 %v98, %v1419
  %v1421 = vpop.f32.mrb[0].mxu0
  %1422 = vmatprep.mubr.f32.mxu0 0.0
  %1423 = vmatmul.mubr.f32.gmra.mrb[0].mxu0 %v1351
  %v1424 = vpop.f32.mrb[0].mxu0
  %v1425 = vadd.f32 %v98, %v1424
  %v1426 = vpop.f32.mrb[0].mxu0
  %1427 = vdwg.mxu0
  %1428 = vst [vmem:[%s3] sm:$0xff] %v1420
  %1429 = vst [vmem:[%s3 + $0x8] sm:$0xff] %v1425
  %v1430 = vlaneseq
  %v1431 = vand.u32 %v1430, 127
  %vm1432 = vcmp.lt.s32.totalorder %v1431, 6
  %v1433 = vsel %vm1432, %v1420, -1e+30
  %v1434 = vsel %vm1432, %v1425, -1e+30
  %1435 = vmax.xlane.f32.xlu0 %v1433
  %v1436 = vpop.xlane.xlu0 %1435
  %1437 = vmax.xlane.f32.xlu0 %v1434
  %v1438 = vpop.xlane.xlu0 %1437
  %v1439 = vsub.f32 %v1433, %v1436
  %v1440 = vsub.f32 %v1434, %v1438
  %v1441 = vmul.f32 %v1439, 1.442695
  %v1442 = vpow.pop %v1441
  %v1443 = vmul.f32 %v1440, 1.442695
  %v1444 = vpow.pop %v1443
  %1445 = vadd.xlane.f32.xlu0 %v1442
  %v1446 = vpop.xlane.xlu0 %1445
  %1447 = vadd.xlane.f32.xlu0 %v1444
  %v1448 = vpop.xlane.xlu0 %1447
  %v1449 = vlog2.pop %v1446
  %v1450 = vmul.f32 %v1449, 0.6931472
  %v1451 = vlog2.pop %v1448
  %v1452 = vmul.f32 %v1451, 0.6931472
  %v1453 = vadd.f32 %v1450, %v1436
  %v1454 = vadd.f32 %v1452, %v1438
  %v1455 = vcvt.s32.f32 %v1431
  %1457 = vset.pattern.permute.xlu0 2
  %1458 = vperm.xlu0 %1457, %v109
  %v1459 = vpop.permute.xlu0 %1458
  %1462 = vset.pattern.permute.xlu0 2
  %1463 = vperm.xlu0 %1462, %v110
  %v1464 = vpop.permute.xlu0 %1463
  %vm1466 = vcmp.eq.f32.partialorder %v1455, %v1459
  %vm1467 = vcmp.eq.f32.partialorder %v1455, %v1464
  %v1468 = vsel %vm1466, 1, 0
  %v1469 = vsel %vm1467, 1, 0
  %v1470 = vcvt.s32.f32 %v1468
  %v1471 = vcvt.s32.f32 %v1469
  %v1472 = vmul.f32 %v1420, %v1470
  %v1473 = vmul.f32 %v1425, %v1471
  %1474 = vadd.xlane.f32.xlu0 %v1472
  %v1475 = vpop.xlane.xlu0 %1474
  %1476 = vadd.xlane.f32.xlu0 %v1473
  %v1477 = vpop.xlane.xlu0 %1476
  %v1478 = vsub.f32 %v1453, %v1475
  %v1479 = vsub.f32 %v1454, %v1477
  %vm1480 = vcmask 39960
  %v1481 = vsel %vm1480, %v109, 0.0
  %v1482 = vsel %vm1480, %v110, 0.0
  %v1483 = vadd.f32 %v1481, %v1482
  %v1484 = vrot.slane %v1483, 4
  %v1485 = vadd.f32 %v1483, %v1484
  %v1486 = vrot.slane %v1485, 2
  %v1487 = vadd.f32 %v1485, %v1486
  %v1488 = vrot.slane %v1487, 1
  %v1489 = vadd.f32 %v1487, %v1488
  %v1490 = vmax.f32 %v1489, 1.0
  %v1491 = vmul.f32 %v1478, %v109
  %v1492 = vmul.f32 %v1479, %v110
  %v1493 = vsel %vm1480, %v1491, 0.0
  %v1494 = vsel %vm1480, %v1492, 0.0
  %v1495 = vadd.f32 %v1493, %v1494
  %v1496 = vrot.slane %v1495, 4
  %v1497 = vadd.f32 %v1495, %v1496
  %v1498 = vrot.slane %v1497, 2
  %v1499 = vadd.f32 %v1497, %v1498
  %v1500 = vrot.slane %v1499, 1
  %v1501 = vadd.f32 %v1499, %v1500
  %v1502 = vrcp.pop %v1490
  %v1503 = vmul.f32 %v1501, %v1502
  %1505 = vrot.lane.b32.xlu0 %v1503, 125
  %v1506 = vpop.permute.xlu0 %1505
  %vm1508 = vcmask 8192
  %1509 = vst.msk [vmem:[%s4] sm:$0x1] %vm1508, %v1506
  // Predicated region
  $region14: #{_forward_core.1} parent=0 // pred_check
    _
  $region15: #{_forward_core.1} parent=0 // pred_check_branch
    %1511 = sbr.rel (0) target = $region17
  $region16: #{_forward_core.1} parent=0 // pred_region
    _
  $region17: #{_forward_core.1} parent=0 // pred_fallthru
    _
  // Predicated region
  $region18: #{_forward_core.1} parent=0 // pred_check
    _
  $region19: #{_forward_core.1} parent=0 // pred_check_branch
    %1513 = sbr.rel (0) target = $region21
  $region20: #{_forward_core.1} parent=0 // pred_region
    _
  $region21: #{_forward_core.1} parent=0 // pred_fallthru
    _
  // Predicated region
  $region22: #{_forward_core.1} parent=0 // pred_check
    _
  $region23: #{_forward_core.1} parent=0 // pred_check_branch
    %1515 = sbr.rel (0) target = $region25
  $region24: #{_forward_core.1} parent=0 // pred_region
    _
  $region25: #{_forward_core.1} parent=0 // pred_fallthru
    _
  // Predicated region
  $region26: #{_forward_core.1} parent=0 // pred_check
    _
  $region27: #{_forward_core.1} parent=0 // pred_check_branch
    %1517 = sbr.rel (0) target = $region29
  $region28: #{_forward_core.1} parent=0 // pred_region
    _
  $region29: #{_forward_core.1} parent=0 // pred_fallthru
    _

</llo_original>
